<compile_context>
chip_gen: v6e
topology: v6e:2x2x1
jax: 0.10.0
libtpu: 0.0.40
codegen_flags: <defaults>
</compile_context>

<pallas_src>
import functools

import jax
import jax.numpy as jnp
from jax import lax
from jax.experimental import pallas as pl
from jax.experimental.pallas import tpu as pltpu


def _conscse_kernel(x_ref, w1_ref, b1_ref, w2_ref, b2_ref, spaw_ref, spab_ref,
                    out_ref, *, inv_hw):
    """One block of Nb images, channels-first flat layout.

    x_ref    : (Nb, C, HWp) f32  -- HWp (multiple of 128) on the lane axis
    w1_ref   : (C, Cr)           -- ChannelSE lin1 weight, pre-transposed
    b1_ref   : (1, Cr)
    w2_ref   : (Cr, C)           -- ChannelSE lin2 weight, pre-transposed
    b2_ref   : (1, C)
    spaw_ref : (C, 1)            -- SpatialSE 1x1 conv weight (column vector)
    spab_ref : (1,) in SMEM      -- SpatialSE 1x1 conv bias (scalar)
    out_ref  : (Nb, C, HWp)
    """
    x = x_ref[...]                                          # (Nb, C, HWp)

    # ---- channel SE, batched over the Nb images of this block --------------
    # Spatial padding (if any) is zeros, so divide the *sum* by the true HW.
    m = jnp.sum(x, axis=2) * inv_hw                         # (Nb, C)
    z = jnp.maximum(
        jnp.dot(m, w1_ref[...], preferred_element_type=jnp.float32,
                precision=lax.Precision.HIGHEST) + b1_ref[...],
        0.0)                                                # (Nb, Cr)
    s = jax.nn.sigmoid(
        jnp.dot(z, w2_ref[...], preferred_element_type=jnp.float32,
                precision=lax.Precision.HIGHEST) + b2_ref[...])  # (Nb, C)

    # ---- spatial SE: broadcast-multiply + sublane reduce over C (no MXU) ----
    spa = jax.nn.sigmoid(
        jnp.sum(x * spaw_ref[...][None], axis=1, keepdims=True)
        + spab_ref[0])                                      # (Nb, 1, HWp)

    # ---- fused output: x*s + x*spa == x*(s + spa) ---------------------------
    out_ref[...] = (x * (s[:, :, None] + spa)).astype(out_ref.dtype)


def conscse_forward(x_nchw, params, *, target_block_bytes=2 << 20):
    """x: (N, C, H, W) NCHW f32, returns (N, C, H, W)."""
    N, C, H, W = x_nchw.shape
    HW = H * W
    Cr = params["fc1w_t"].shape[1]

    # Lane-dense spatial axis: pad HW up to a multiple of 128 with zeros.
    HWp = ((HW + 127) // 128) * 128
    x_flat = x_nchw.reshape(N, C, HW)
    if HWp != HW:
        x_flat = jnp.pad(x_flat, ((0, 0), (0, 0), (0, HWp - HW)))

    # Batch several images per grid step (~target_block_bytes per block) but,
    # when N >= 2, keep >= 2 grid steps so v7x's two TensorCores both get work.
    img_bytes = C * HWp * 4
    nb = max(1, min(N, target_block_bytes // max(img_bytes, 1)))
    if N >= 2:
        nb = min(nb, (N + 1) // 2)
    Np = pl.cdiv(N, nb) * nb
    if Np != N:
        x_flat = jnp.pad(x_flat, ((0, Np - N), (0, 0), (0, 0)))
    grid_n = Np // nb

    # Double-buffered in + out blocks plus tiny weight tiles.  Pin an explicit,
    # v7x-safe (<= 48 MiB of its 64 MiB) VMEM limit so a larger block target
    # can't silently OOM; v5e/v6e have far more headroom.
    block_bytes = nb * C * HWp * 4
    vmem_limit = int(min(48 << 20, max(32 << 20, 4 * block_bytes + (1 << 20))))

    kernel = functools.partial(_conscse_kernel, inv_hw=1.0 / HW)

    out_flat = pl.pallas_call(
        kernel,
        out_shape=jax.ShapeDtypeStruct((Np, C, HWp), jnp.float32),
        grid_spec=pltpu.PrefetchScalarGridSpec(
            num_scalar_prefetch=0,
            grid=(grid_n,),
            in_specs=[
                pl.BlockSpec((nb, C, HWp), lambda n: (n, 0, 0)),
                pl.BlockSpec((C, Cr), lambda n: (0, 0)),
                pl.BlockSpec((1, Cr), lambda n: (0, 0)),
                pl.BlockSpec((Cr, C), lambda n: (0, 0)),
                pl.BlockSpec((1, C), lambda n: (0, 0)),
                pl.BlockSpec((C, 1), lambda n: (0, 0)),
                pl.BlockSpec(memory_space=pltpu.MemorySpace.SMEM),
            ],
            out_specs=pl.BlockSpec((nb, C, HWp), lambda n: (n, 0, 0)),
        ),
        compiler_params=pltpu.CompilerParams(
            dimension_semantics=("parallel",),
            vmem_limit_bytes=vmem_limit),
    )(x_flat, params["fc1w_t"], params["fc1b"], params["fc2w_t"],
      params["fc2b"], params["spaw"], params["spab"])

    if Np != N or HWp != HW:
        out_flat = out_flat[:N, :, :HW]
    return out_flat.reshape(N, C, H, W)


if __name__ == "__main__":
    n_filters = 32
    cr = n_filters // 2
    N, H, W = 2, 16, 16

    key = jax.random.PRNGKey(0)
    ks = jax.random.split(key, 8)

    def rnd(k, shape, scale=0.1):
        return (scale * jax.random.normal(k, shape)).astype(jnp.float32)

    # --- deterministic parameters (PyTorch layouts) ---
    lin1_w = rnd(ks[0], (cr, n_filters)); lin1_b = rnd(ks[1], (cr,))
    lin2_w = rnd(ks[2], (n_filters, cr)); lin2_b = rnd(ks[3], (n_filters,))
    conv_w = rnd(ks[4], (1, n_filters, 1, 1)); conv_b = rnd(ks[5], (1,))
    x = rnd(ks[6], (N, n_filters, H, W), scale=1.0)

    params = dict(
        fc1w_t=lin1_w.T,                           # (C, Cr)  pre-transposed
        fc1b=lin1_b.reshape(1, cr),                # (1, Cr)
        fc2w_t=lin2_w.T,                           # (Cr, C)  pre-transposed
        fc2b=lin2_b.reshape(1, n_filters),         # (1, C)
        spaw=conv_w.reshape(n_filters, 1),         # (C, 1)
        spab=conv_b.reshape(1),                    # (1,)  scalar, SMEM
    )

    out = jax.block_until_ready(conscse_forward(x, params))
    assert out.shape == (N, n_filters, H, W)

    # --- pure-JAX reference for sanity ---
    m = jnp.mean(x, axis=(2, 3))                                   # (N, C)
    z = jax.nn.relu(m @ lin1_w.T + lin1_b)                         # (N, Cr)
    s = jax.nn.sigmoid(z @ lin2_w.T + lin2_b)                      # (N, C)
    cse = x * s[:, :, None, None]
    spa = jax.nn.sigmoid(
        jnp.einsum("nchw,c->nhw", x, conv_w.reshape(n_filters)) + conv_b[0])
    sse = x * spa[:, None, :, :]
    ref = cse + sse

    assert jnp.allclose(out, ref, atol=1e-4, rtol=1e-4), \
        float(jnp.max(jnp.abs(out - ref)))
    print("KERNEL_OK")
</pallas_src>

<mosaic_0001>
module attributes {stable_mosaic.version = 11 : i64} {
  func.func @_conscse_kernel(%arg0: i32, %arg1: memref<1x32x256xf32, #tpu.memory_space<vmem>>, %arg2: memref<32x16xf32, #tpu.memory_space<vmem>>, %arg3: memref<1x16xf32, #tpu.memory_space<vmem>>, %arg4: memref<16x32xf32, #tpu.memory_space<vmem>>, %arg5: memref<1x32xf32, #tpu.memory_space<vmem>>, %arg6: memref<32x1xf32, #tpu.memory_space<vmem>>, %arg7: memref<1xf32, #tpu.memory_space<smem>>, %arg8: memref<1x32x256xf32, #tpu.memory_space<vmem>>) attributes {dimension_semantics = [#tpu.dimension_semantics<parallel>], iteration_bounds = array<i64: 2>, scalar_prefetch = 0 : i64, scratch_operands = 0 : i64, tpu.core_type = #tpu.core_type<tc>, window_params = [{transform_indices = @transform_0, window_bounds = array<i64: 1, 32, 256>}, {pipeline_mode = #tpu.pipeline_mode<synchronous>, transform_indices = @transform_1, window_bounds = array<i64: 32, 16>}, {pipeline_mode = #tpu.pipeline_mode<synchronous>, transform_indices = @transform_2, window_bounds = array<i64: 1, 16>}, {pipeline_mode = #tpu.pipeline_mode<synchronous>, transform_indices = @transform_3, window_bounds = array<i64: 16, 32>}, {pipeline_mode = #tpu.pipeline_mode<synchronous>, transform_indices = @transform_4, window_bounds = array<i64: 1, 32>}, {pipeline_mode = #tpu.pipeline_mode<synchronous>, transform_indices = @transform_5, window_bounds = array<i64: 32, 1>}, {transform_indices = @transform_6, window_bounds = array<i64: 1>}, {transform_indices = @transform_7, window_bounds = array<i64: 1, 32, 256>}]} {
    %c0 = arith.constant 0 : index
    %c0_0 = arith.constant 0 : index
    %c0_1 = arith.constant 0 : index
    %0 = vector.load %arg1[%c0, %c0_0, %c0_1] : memref<1x32x256xf32, #tpu.memory_space<vmem>>, vector<1x32x256xf32>
    %cst = arith.constant dense<0.000000e+00> : vector<1x32xf32>
    %1 = vector.multi_reduction <add>, %0, %cst [2] : vector<1x32x256xf32> to vector<1x32xf32>
    %cst_2 = arith.constant 3.906250e-03 : f32
    %2 = vector.broadcast %cst_2 : f32 to vector<1x32xf32>
    %3 = arith.mulf %1, %2 : vector<1x32xf32>
    %c0_3 = arith.constant 0 : index
    %c0_4 = arith.constant 0 : index
    %4 = vector.load %arg2[%c0_3, %c0_4] : memref<32x16xf32, #tpu.memory_space<vmem>>, vector<32x16xf32>
    %cst_5 = arith.constant dense<0.000000e+00> : vector<1x16xf32>
    %5 = tpu.matmul %3, %4, %cst_5 {dimension_numbers = #tpu.dot_dimension_numbers<[1], [0], [0], [1], [0, 0, 1, 1], [], []>, precision = #tpu.contract_precision<fp32>} : vector<1x32xf32>, vector<32x16xf32>, vector<1x16xf32> -> vector<1x16xf32>
    %c0_6 = arith.constant 0 : index
    %c0_7 = arith.constant 0 : index
    %6 = vector.load %arg3[%c0_6, %c0_7] : memref<1x16xf32, #tpu.memory_space<vmem>>, vector<1x16xf32>
    %7 = arith.addf %5, %6 : vector<1x16xf32>
    %cst_8 = arith.constant 0.000000e+00 : f32
    %8 = vector.broadcast %cst_8 : f32 to vector<1x16xf32>
    %9 = arith.maximumf %7, %8 : vector<1x16xf32>
    %c0_9 = arith.constant 0 : index
    %c0_10 = arith.constant 0 : index
    %10 = vector.load %arg4[%c0_9, %c0_10] : memref<16x32xf32, #tpu.memory_space<vmem>>, vector<16x32xf32>
    %cst_11 = arith.constant dense<0.000000e+00> : vector<1x32xf32>
    %11 = tpu.matmul %9, %10, %cst_11 {dimension_numbers = #tpu.dot_dimension_numbers<[1], [0], [0], [1], [0, 0, 1, 1], [], []>, precision = #tpu.contract_precision<fp32>} : vector<1x16xf32>, vector<16x32xf32>, vector<1x32xf32> -> vector<1x32xf32>
    %c0_12 = arith.constant 0 : index
    %c0_13 = arith.constant 0 : index
    %12 = vector.load %arg5[%c0_12, %c0_13] : memref<1x32xf32, #tpu.memory_space<vmem>>, vector<1x32xf32>
    %13 = arith.addf %11, %12 : vector<1x32xf32>
    %14 = arith.negf %13 : vector<1x32xf32>
    %15 = math.exp %14 : vector<1x32xf32>
    %cst_14 = arith.constant 1.000000e+00 : f32
    %16 = vector.broadcast %cst_14 : f32 to vector<1x32xf32>
    %17 = arith.addf %16, %15 : vector<1x32xf32>
    %18 = arith.divf %16, %17 : vector<1x32xf32>
    %c0_15 = arith.constant 0 : index
    %c0_16 = arith.constant 0 : index
    %19 = vector.load %arg6[%c0_15, %c0_16] : memref<32x1xf32, #tpu.memory_space<vmem>>, vector<32x1xf32>
    %20 = vector.shape_cast %19 : vector<32x1xf32> to vector<1x32x1xf32>
    %21 = vector.broadcast %20 : vector<1x32x1xf32> to vector<1x32x256xf32>
    %22 = arith.mulf %0, %21 : vector<1x32x256xf32>
    %cst_17 = arith.constant dense<0.000000e+00> : vector<1x256xf32>
    %23 = vector.multi_reduction <add>, %22, %cst_17 [1] : vector<1x32x256xf32> to vector<1x256xf32>
    %24 = vector.shape_cast %23 : vector<1x256xf32> to vector<1x1x256xf32>
    %c0_18 = arith.constant 0 : index
    %25 = memref.load %arg7[%c0_18] : memref<1xf32, #tpu.memory_space<smem>>
    %26 = vector.broadcast %25 : f32 to vector<1x1x256xf32>
    %27 = arith.addf %24, %26 : vector<1x1x256xf32>
    %28 = arith.negf %27 : vector<1x1x256xf32>
    %29 = math.exp %28 : vector<1x1x256xf32>
    %cst_19 = arith.constant 1.000000e+00 : f32
    %30 = vector.broadcast %cst_19 : f32 to vector<1x1x256xf32>
    %31 = arith.addf %30, %29 : vector<1x1x256xf32>
    %32 = arith.divf %30, %31 : vector<1x1x256xf32>
    %33 = vector.shape_cast %18 : vector<1x32xf32> to vector<1x32x1xf32>
    %34 = vector.broadcast %33 : vector<1x32x1xf32> to vector<1x32x256xf32>
    %35 = vector.broadcast %32 : vector<1x1x256xf32> to vector<1x32x256xf32>
    %36 = arith.addf %34, %35 : vector<1x32x256xf32>
    %37 = arith.mulf %0, %36 : vector<1x32x256xf32>
    %c0_20 = arith.constant 0 : index
    %c0_21 = arith.constant 0 : index
    %c0_22 = arith.constant 0 : index
    %38 = vector.load %arg8[%c0_20, %c0_21, %c0_22] : memref<1x32x256xf32, #tpu.memory_space<vmem>>, vector<1x32x256xf32>
    tpu.vector_store %arg8[%c0_20, %c0_21, %c0_22], %37 {strides = array<i32>} : memref<1x32x256xf32, #tpu.memory_space<vmem>>, vector<1x32x256xf32>,
    return
  }
  func.func @transform_0(%arg0: i32) -> (i32, i32, i32) {
    %c0_i32 = arith.constant 0 : i32
    %c0_i32_0 = arith.constant 0 : i32
    %c0_i32_1 = arith.constant 0 : i32
    return %arg0, %c0_i32, %c0_i32_0 : i32, i32, i32
  }
  func.func @transform_1(%arg0: i32) -> (i32, i32) {
    %c0_i32 = arith.constant 0 : i32
    %c0_i32_0 = arith.constant 0 : i32
    %c0_i32_1 = arith.constant 0 : i32
    return %c0_i32, %c0_i32_0 : i32, i32
  }
  func.func @transform_2(%arg0: i32) -> (i32, i32) {
    %c0_i32 = arith.constant 0 : i32
    %c0_i32_0 = arith.constant 0 : i32
    %c0_i32_1 = arith.constant 0 : i32
    return %c0_i32, %c0_i32_0 : i32, i32
  }
  func.func @transform_3(%arg0: i32) -> (i32, i32) {
    %c0_i32 = arith.constant 0 : i32
    %c0_i32_0 = arith.constant 0 : i32
    %c0_i32_1 = arith.constant 0 : i32
    return %c0_i32, %c0_i32_0 : i32, i32
  }
  func.func @transform_4(%arg0: i32) -> (i32, i32) {
    %c0_i32 = arith.constant 0 : i32
    %c0_i32_0 = arith.constant 0 : i32
    %c0_i32_1 = arith.constant 0 : i32
    return %c0_i32, %c0_i32_0 : i32, i32
  }
  func.func @transform_5(%arg0: i32) -> (i32, i32) {
    %c0_i32 = arith.constant 0 : i32
    %c0_i32_0 = arith.constant 0 : i32
    %c0_i32_1 = arith.constant 0 : i32
    return %c0_i32, %c0_i32_0 : i32, i32
  }
  func.func @transform_6(%arg0: i32) -> i32 {
    %c0_i32 = arith.constant 0 : i32
    %c0_i32_0 = arith.constant 0 : i32
    return %c0_i32 : i32
  }
  func.func @transform_7(%arg0: i32) -> (i32, i32, i32) {
    %c0_i32 = arith.constant 0 : i32
    %c0_i32_0 = arith.constant 0 : i32
    %c0_i32_1 = arith.constant 0 : i32
    return %arg0, %c0_i32, %c0_i32_0 : i32, i32, i32
  }
}

</mosaic_0001>

<llo_original>
// kernel: tpu_custom_call.1
$region0: #{tpu_custom_call.1}
  #allocation0 [shape = 'u32[]', space=smem, size = 0x4, offset = 0x4, fixed_abs, tag = 'smem constant byte address 0x4 - core index']
  #allocation1 [shape = 'u32[144,128]{1,0:T(1,128)}', space=vmem, size = 0x12000, scoped, tag = 'internal scratch']
  #allocation2 [shape = 'f32[1]{0:T(128)S(6)}', space=smem, size = 0x200, scoped, tag = 'scoped memory for tpu_custom_call.1']
  %s0 = inlined_call_operand.hbm [shape: f32[2,32,256], index: 0, kind: input, shape index: {}]
  %s1 = inlined_call_operand.vmem [shape: f32[32,16], index: 1, kind: input, shape index: {}]
  %s2 = inlined_call_operand.vmem [shape: f32[1,16], index: 2, kind: input, shape index: {}]
  %s3 = inlined_call_operand.vmem [shape: f32[16,32], index: 3, kind: input, shape index: {}]
  %s4 = inlined_call_operand.vmem [shape: f32[1,32], index: 4, kind: input, shape index: {}]
  %s5 = inlined_call_operand.vmem [shape: f32[32,1], index: 5, kind: input, shape index: {}]
  %s6 = inlined_call_operand.<no memory space> [shape: f32[1], index: 6, kind: input, shape index: {}]
  %s7 = inlined_call_operand.hbm [shape: f32[2,32,256], index: 7, kind: output, shape index: {}]
  %s8 = sld [smem:[#allocation0]]
  $region65: #{tpu_custom_call.1} parent=0
    _
  %s10 = ssub.s32 1, %s8
  %s11 = scalar_select 0, %s10, %s8
  %12 = sst [smem:[#allocation2]] %s6
  $region1: #{tpu_custom_call.1} parent=0
    #allocation3 [shape = 'u8[65536]{0}', space=vmem, size = 0x10000, scoped, tag = 'input window, operand 0']
    #allocation4 [shape = 's32[2]{0}', space=sflag, size = 0x8, scoped, tag = 'scoped memory for tpu_custom_call.1']
    #allocation5 [shape = 's32[2]{0}', space=sflag, size = 0x8, scoped, tag = 'scoped memory for tpu_custom_call.1']
    #allocation6 [shape = 'u8[65536]{0}', space=vmem, size = 0x10000, scoped, tag = 'output window, operand 0']
    %13 = vsyncpa [#allocation4], 0
    %s14 = scalar_lea.sflag [#allocation4], 1
    %15 = vsyncpa %s14, 0
    %16 = vsyncpa [#allocation5], 0
    %s17 = scalar_lea.sflag [#allocation5], 1
    %18 = vsyncpa %s17, 0
    loop: start=0, step=1, limit=4
    $region2: #{tpu_custom_call.1} parent=1 // loop_pre_header
      _
    $region3: #{tpu_custom_call.1} parent=1 // loop_header
      %s20 = sphi 0, %s24
      %p21 = scmp.ge.s32.totalorder %s20, 4
      %s30 = sphi 0, %s32
      %s33 = sphi 0, %s30
      %s34 = sphi 0, %s33
      %s50 = sphi 0, %s34
      %s54 = sphi 0, %s54
      %s56 = sphi 0, %s54
      %s57 = sphi 0, %s56
      %s71 = sphi 0, %s57
      %s75 = sphi 0, %s75
      %s77 = sphi 0, %s75
      %s78 = sphi 0, %s77
      %s92 = sphi 0, %s78
      %s96 = sphi 0, %s96
      %s98 = sphi 0, %s96
      %s99 = sphi 0, %s98
      %s113 = sphi 0, %s99
      %s117 = sphi 0, %s117
      %s119 = sphi 0, %s117
      %s120 = sphi 0, %s119
      %s134 = sphi 0, %s120
      %s138 = sphi 0, %s138
      %s140 = sphi 0, %s138
      %s141 = sphi 0, %s140
      %s155 = sphi 0, %s141
      %s159 = sphi 0, %s159
      %s161 = sphi 0, %s159
      %s162 = sphi 0, %s161
      %s176 = sphi 0, %s162
      %s182 = sphi 0, %s184
      %s185 = sphi 0, %s182
      %s186 = sphi 0, %s185
      %s202 = sphi 0, %s186
    $region4: #{tpu_custom_call.1} parent=1 // loop_header_branch
      %23 = sbr.rel (%p21) target = $region8
    $region5: #{tpu_custom_call.1} parent=1 // loop_body
      %s25 = ssub.s32 %s20, 1
      %s26 = ssub.s32 %s20, 2
      %s27 = sadd.s32 %s20, 1
      %s28 = ssub.s32 %s20, %s27
      %p29 = scmp.eq.s32.totalorder %s28, 0
      %s31 = sadd.s32 %s30, 1
      %s32 = scalar_select %p29, %s30, %s31
      %p35 = pneg %p29
      %p36 = scmp.eq.s32.totalorder %s20, 1
      %p37 = por %p35, %p36
      %p38 = scmp.ne.s32.totalorder %s30, %s33
      %p39 = scmp.eq.s32.totalorder %s20, 0
      %p40 = por %p38, %p39
      %p41 = scmp.ne.s32.totalorder %s30, %s33
      %p42 = scmp.eq.s32.totalorder %s25, 1
      %p43 = por %p41, %p42
      %p44 = scmp.ne.s32.totalorder %s33, %s34
      %p45 = scmp.eq.s32.totalorder %s25, 0
      %p46 = por %p44, %p45
      %p47 = scmp.ne.s32.totalorder %s33, %s34
      %p48 = scmp.eq.s32.totalorder %s26, 1
      %p49 = por %p47, %p48
      %p51 = scmp.ne.s32.totalorder %s34, %s50
      %p52 = scmp.eq.s32.totalorder %s26, 0
      %p53 = por %p51, %p52
      %s55 = sadd.s32 %s54, 1
      %p58 = scmp.eq.s32.totalorder %s20, 1
      %p59 = scmp.ne.s32.totalorder %s54, %s56
      %p60 = scmp.eq.s32.totalorder %s20, 0
      %p61 = por %p59, %p60
      %p62 = scmp.ne.s32.totalorder %s54, %s56
      %p63 = scmp.eq.s32.totalorder %s25, 1
      %p64 = por %p62, %p63
      %p65 = scmp.ne.s32.totalorder %s56, %s57
      %p66 = scmp.eq.s32.totalorder %s25, 0
      %p67 = por %p65, %p66
      %p68 = scmp.ne.s32.totalorder %s56, %s57
      %p69 = scmp.eq.s32.totalorder %s26, 1
      %p70 = por %p68, %p69
      %p72 = scmp.ne.s32.totalorder %s57, %s71
      %p73 = scmp.eq.s32.totalorder %s26, 0
      %p74 = por %p72, %p73
      %s76 = sadd.s32 %s75, 1
      %p79 = scmp.eq.s32.totalorder %s20, 1
      %p80 = scmp.ne.s32.totalorder %s75, %s77
      %p81 = scmp.eq.s32.totalorder %s20, 0
      %p82 = por %p80, %p81
      %p83 = scmp.ne.s32.totalorder %s75, %s77
      %p84 = scmp.eq.s32.totalorder %s25, 1
      %p85 = por %p83, %p84
      %p86 = scmp.ne.s32.totalorder %s77, %s78
      %p87 = scmp.eq.s32.totalorder %s25, 0
      %p88 = por %p86, %p87
      %p89 = scmp.ne.s32.totalorder %s77, %s78
      %p90 = scmp.eq.s32.totalorder %s26, 1
      %p91 = por %p89, %p90
      %p93 = scmp.ne.s32.totalorder %s78, %s92
      %p94 = scmp.eq.s32.totalorder %s26, 0
      %p95 = por %p93, %p94
      %s97 = sadd.s32 %s96, 1
      %p100 = scmp.eq.s32.totalorder %s20, 1
      %p101 = scmp.ne.s32.totalorder %s96, %s98
      %p102 = scmp.eq.s32.totalorder %s20, 0
      %p103 = por %p101, %p102
      %p104 = scmp.ne.s32.totalorder %s96, %s98
      %p105 = scmp.eq.s32.totalorder %s25, 1
      %p106 = por %p104, %p105
      %p107 = scmp.ne.s32.totalorder %s98, %s99
      %p108 = scmp.eq.s32.totalorder %s25, 0
      %p109 = por %p107, %p108
      %p110 = scmp.ne.s32.totalorder %s98, %s99
      %p111 = scmp.eq.s32.totalorder %s26, 1
      %p112 = por %p110, %p111
      %p114 = scmp.ne.s32.totalorder %s99, %s113
      %p115 = scmp.eq.s32.totalorder %s26, 0
      %p116 = por %p114, %p115
      %s118 = sadd.s32 %s117, 1
      %p121 = scmp.eq.s32.totalorder %s20, 1
      %p122 = scmp.ne.s32.totalorder %s117, %s119
      %p123 = scmp.eq.s32.totalorder %s20, 0
      %p124 = por %p122, %p123
      %p125 = scmp.ne.s32.totalorder %s117, %s119
      %p126 = scmp.eq.s32.totalorder %s25, 1
      %p127 = por %p125, %p126
      %p128 = scmp.ne.s32.totalorder %s119, %s120
      %p129 = scmp.eq.s32.totalorder %s25, 0
      %p130 = por %p128, %p129
      %p131 = scmp.ne.s32.totalorder %s119, %s120
      %p132 = scmp.eq.s32.totalorder %s26, 1
      %p133 = por %p131, %p132
      %p135 = scmp.ne.s32.totalorder %s120, %s134
      %p136 = scmp.eq.s32.totalorder %s26, 0
      %p137 = por %p135, %p136
      %s139 = sadd.s32 %s138, 1
      %p142 = scmp.eq.s32.totalorder %s20, 1
      %p143 = scmp.ne.s32.totalorder %s138, %s140
      %p144 = scmp.eq.s32.totalorder %s20, 0
      %p145 = por %p143, %p144
      %p146 = scmp.ne.s32.totalorder %s138, %s140
      %p147 = scmp.eq.s32.totalorder %s25, 1
      %p148 = por %p146, %p147
      %p149 = scmp.ne.s32.totalorder %s140, %s141
      %p150 = scmp.eq.s32.totalorder %s25, 0
      %p151 = por %p149, %p150
      %p152 = scmp.ne.s32.totalorder %s140, %s141
      %p153 = scmp.eq.s32.totalorder %s26, 1
      %p154 = por %p152, %p153
      %p156 = scmp.ne.s32.totalorder %s141, %s155
      %p157 = scmp.eq.s32.totalorder %s26, 0
      %p158 = por %p156, %p157
      %s160 = sadd.s32 %s159, 1
      %p163 = scmp.eq.s32.totalorder %s20, 1
      %p164 = scmp.ne.s32.totalorder %s159, %s161
      %p165 = scmp.eq.s32.totalorder %s20, 0
      %p166 = por %p164, %p165
      %p167 = scmp.ne.s32.totalorder %s159, %s161
      %p168 = scmp.eq.s32.totalorder %s25, 1
      %p169 = por %p167, %p168
      %p170 = scmp.ne.s32.totalorder %s161, %s162
      %p171 = scmp.eq.s32.totalorder %s25, 0
      %p172 = por %p170, %p171
      %p173 = scmp.ne.s32.totalorder %s161, %s162
      %p174 = scmp.eq.s32.totalorder %s26, 1
      %p175 = por %p173, %p174
      %p177 = scmp.ne.s32.totalorder %s162, %s176
      %p178 = scmp.eq.s32.totalorder %s26, 0
      %p179 = por %p177, %p178
      %s180 = ssub.s32 %s20, %s27
      %p181 = scmp.eq.s32.totalorder %s180, 0
      %s183 = sadd.s32 %s182, 1
      %s184 = scalar_select %p181, %s182, %s183
      %p187 = pneg %p181
      %p188 = scmp.eq.s32.totalorder %s20, 1
      %p189 = por %p187, %p188
      %p190 = scmp.ne.s32.totalorder %s182, %s185
      %p191 = scmp.eq.s32.totalorder %s20, 0
      %p192 = por %p190, %p191
      %p193 = scmp.ne.s32.totalorder %s182, %s185
      %p194 = scmp.eq.s32.totalorder %s25, 1
      %p195 = por %p193, %p194
      %p196 = scmp.ne.s32.totalorder %s185, %s186
      %p197 = scmp.eq.s32.totalorder %s25, 0
      %p198 = por %p196, %p197
      %p199 = scmp.ne.s32.totalorder %s185, %s186
      %p200 = scmp.eq.s32.totalorder %s26, 1
      %p201 = por %p199, %p200
      %p203 = scmp.ne.s32.totalorder %s186, %s202
      %p204 = scmp.eq.s32.totalorder %s26, 0
      %p205 = por %p203, %p204
      %p206 = scmp.le.s32.totalorder 1, %s20
      %p207 = scmp.lt.s32.totalorder %s20, 3
      %p208 = pnand %p206, %p207
      %p209 = pneg %p208
      // Predicated region
      $region9: #{tpu_custom_call.1} parent=5 // pred_check
        _
      $region10: #{tpu_custom_call.1} parent=5 // pred_check_branch
        %211 = sbr.rel (%p208) target = $region12
      $region11: #{tpu_custom_call.1} parent=5 // pred_region
        %s212 = ssub.s32 %s20, 1
        // Predicated region
        $region13: #{tpu_custom_call.1} parent=11 // pred_check
          %p213 = pneg %p67
        $region14: #{tpu_custom_call.1} parent=11 // pred_check_branch
          %215 = sbr.rel (%p213) target = $region16
        $region15: #{tpu_custom_call.1} parent=11 // pred_region
          _
        $region16: #{tpu_custom_call.1} parent=11 // pred_fallthru
          _
        // Predicated region
        $region17: #{tpu_custom_call.1} parent=11 // pred_check
          %p216 = pneg %p88
        $region18: #{tpu_custom_call.1} parent=11 // pred_check_branch
          %218 = sbr.rel (%p216) target = $region20
        $region19: #{tpu_custom_call.1} parent=11 // pred_region
          _
        $region20: #{tpu_custom_call.1} parent=11 // pred_fallthru
          _
        // Predicated region
        $region21: #{tpu_custom_call.1} parent=11 // pred_check
          %p219 = pneg %p109
        $region22: #{tpu_custom_call.1} parent=11 // pred_check_branch
          %221 = sbr.rel (%p219) target = $region24
        $region23: #{tpu_custom_call.1} parent=11 // pred_region
          _
        $region24: #{tpu_custom_call.1} parent=11 // pred_fallthru
          _
        // Predicated region
        $region25: #{tpu_custom_call.1} parent=11 // pred_check
          %p222 = pneg %p130
        $region26: #{tpu_custom_call.1} parent=11 // pred_check_branch
          %224 = sbr.rel (%p222) target = $region28
        $region27: #{tpu_custom_call.1} parent=11 // pred_region
          _
        $region28: #{tpu_custom_call.1} parent=11 // pred_fallthru
          _
        // Predicated region
        $region29: #{tpu_custom_call.1} parent=11 // pred_check
          %p225 = pneg %p151
        $region30: #{tpu_custom_call.1} parent=11 // pred_check_branch
          %227 = sbr.rel (%p225) target = $region32
        $region31: #{tpu_custom_call.1} parent=11 // pred_region
          _
        $region32: #{tpu_custom_call.1} parent=11 // pred_fallthru
          _
        // Predicated region
        $region33: #{tpu_custom_call.1} parent=11 // pred_check
          %p228 = pneg %p172
        $region34: #{tpu_custom_call.1} parent=11 // pred_check_branch
          %230 = sbr.rel (%p228) target = $region36
        $region35: #{tpu_custom_call.1} parent=11 // pred_region
          _
        $region36: #{tpu_custom_call.1} parent=11 // pred_fallthru
          _
      $region12: #{tpu_custom_call.1} parent=5 // pred_fallthru
        _
      %p231 = scmp.lt.s32.totalorder %s20, 2
      // Predicated region
      $region37: #{tpu_custom_call.1} parent=5 // pred_check
        %p232 = pneg %p231
      $region38: #{tpu_custom_call.1} parent=5 // pred_check_branch
        %234 = sbr.rel (%p232) target = $region40
      $region39: #{tpu_custom_call.1} parent=5 // pred_region
        // Predicated region
        $region41: #{tpu_custom_call.1} parent=39 // pred_check
          %p235 = pneg %p40
        $region42: #{tpu_custom_call.1} parent=39 // pred_check_branch
          %237 = sbr.rel (%p235) target = $region44
        $region43: #{tpu_custom_call.1} parent=39 // pred_region
          %s238 = sand.u32 %s30, 1
          %s239 = scalar_lea.sflag [#allocation4], %s238
          %s240 = sand.u32 %s30, 1
          %s241 = smul.addr %s240, 64
          %s242 = scalar_lea.vmem [#allocation3], %s241
          %s244 = ssub.s32 1024, 1024
          %245 = vsyncadd %s239, %s244
          %s246 = smul.addr %s20, 8
          %s247 = smul.addr %s246, 128
          %s248 = scalar_lea.hbm %s0, %s247
          %s249 = sshll.u32 %s242, 4
          %s250 = int_to_ptr.vmem [resolvable:$true] %s249
          %255 = dma.hbm_to_vmem [thread:$0]  %s248, 1024, %s250, %s239, 256, 256, 16
        $region44: #{tpu_custom_call.1} parent=39 // pred_fallthru
          _
      $region40: #{tpu_custom_call.1} parent=5 // pred_fallthru
        _
      %p256 = scmp.le.s32.totalorder 1, %s20
      %p257 = scmp.lt.s32.totalorder %s20, 3
      %p258 = pnand %p256, %p257
      %p259 = pneg %p258
      // Predicated region
      $region45: #{tpu_custom_call.1} parent=5 // pred_check
        _
      $region46: #{tpu_custom_call.1} parent=5 // pred_check_branch
        %261 = sbr.rel (%p258) target = $region48
      $region47: #{tpu_custom_call.1} parent=5 // pred_region
        %s262 = ssub.s32 %s20, 1
        %s263 = sand.u32 %s33, 1
        %s264 = scalar_lea.sflag [#allocation4], %s263
        %s265 = sand.u32 %s33, 1
        %s266 = smul.addr %s265, 64
        %s267 = scalar_lea.vmem [#allocation3], %s266
        // Predicated region
        $region49: #{tpu_custom_call.1} parent=47 // pred_check
          %p268 = pneg %p46
        $region50: #{tpu_custom_call.1} parent=47 // pred_check_branch
          %270 = sbr.rel (%p268) target = $region52
        $region51: #{tpu_custom_call.1} parent=47 // pred_region
          %271 = dma.done %s264, 1024
        $region52: #{tpu_custom_call.1} parent=47 // pred_fallthru
          _
        %s272 = sand.u32 %s33, 1
        %s273 = scalar_lea.sflag [#allocation4], %s272
        %s274 = sand.u32 %s33, 1
        %s275 = smul.addr %s274, 64
        %s276 = scalar_lea.vmem [#allocation3], %s275
        %p277 = pneg %p46
        %p278 = pneg %p43
        %p279 = pneg %p67
        %p280 = pneg %p64
        %p281 = pneg %p88
        %p282 = pneg %p85
        %p283 = pneg %p109
        %p284 = pneg %p106
        %p285 = pneg %p130
        %p286 = pneg %p127
        %p287 = pneg %p151
        %p288 = pneg %p148
        %p289 = pneg %p172
        %p290 = pneg %p169
        %p291 = pneg %p198
        %p292 = pneg %p195
        %s293 = sand.u32 %s185, 1
        %s294 = scalar_lea.sflag [#allocation5], %s293
        %s295 = sand.u32 %s185, 1
        %s296 = smul.addr %s295, 64
        %s297 = scalar_lea.vmem [#allocation6], %s296
        %v298 = vld [vmem:[%s267] sm:$0xff]
        %v299 = vld [vmem:[%s267 + $0x8] sm:$0xff]
        %v300 = vld [vmem:[%s267 + $0x10] sm:$0xff]
        %v301 = vld [vmem:[%s267 + $0x18] sm:$0xff]
        %v302 = vld [vmem:[%s267 + $0x20] sm:$0xff]
        %v303 = vld [vmem:[%s267 + $0x28] sm:$0xff]
        %v304 = vld [vmem:[%s267 + $0x30] sm:$0xff]
        %v305 = vld [vmem:[%s267 + $0x38] sm:$0xff]
        %v306 = vadd.f32 %v298, %v299
        %307 = vadd.xlane.f32.xlu0 %v306
        %v308 = vpop.xlane.xlu0 %307
        %v309 = vadd.f32 %v300, %v301
        %310 = vadd.xlane.f32.xlu0 %v309
        %v311 = vpop.xlane.xlu0 %310
        %v312 = vadd.f32 %v302, %v303
        %313 = vadd.xlane.f32.xlu0 %v312
        %v314 = vpop.xlane.xlu0 %313
        %v315 = vadd.f32 %v304, %v305
        %316 = vadd.xlane.f32.xlu0 %v315
        %v317 = vpop.xlane.xlu0 %316
        %v318 = vmul.f32 %v308, 0.00390625
        %v319 = vmul.f32 %v311, 0.00390625
        %v320 = vmul.f32 %v314, 0.00390625
        %v321 = vmul.f32 %v317, 0.00390625
        %v322 = vld [vmem:[%s1] sm:$0xff]
        %v323 = vld [vmem:[%s1 + $0x8] sm:$0xff]
        %v324 = vld [vmem:[%s1 + $0x10] sm:$0xff]
        %v325 = vld [vmem:[%s1 + $0x18] sm:$0xff]
        %v326 = vld [vmem:[%s2] sm:$0x1]
        %v331 = vlaneseq
        %v332 = vand.u32 %v331, 127
        %v333 = vlaneseq
        %v334 = vshrl.u32 %v333, 7
        %v335 = vsub.s32 %v332, %v334
        %v336 = vrot.slane %v318, %v335
        %v337 = vadd.s32 %v332, 4294967288
        %v338 = vlaneseq
        %v339 = vshrl.u32 %v338, 7
        %v340 = vsub.s32 %v337, %v339
        %v341 = vrot.slane %v319, %v340
        %vm342 = vcmask 130112
        %v343 = vsel %vm342, %v341, %v336
        %v344 = vadd.s32 %v332, 4294967280
        %v345 = vlaneseq
        %v346 = vshrl.u32 %v345, 7
        %v347 = vsub.s32 %v344, %v346
        %v348 = vrot.slane %v320, %v347
        %vm349 = vcmask 195712
        %v350 = vsel %vm349, %v348, %v343
        %v351 = vadd.s32 %v332, 4294967272
        %v352 = vlaneseq
        %v353 = vshrl.u32 %v352, 7
        %v354 = vsub.s32 %v351, %v353
        %v355 = vrot.slane %v321, %v354
        %vm356 = vcmask 261312
        %v357 = vsel %vm356, %v355, %v350
        %vm358 = vcmask 261120
        %v359 = vsel %vm358, %v357, 0
        %361 = vmatprep.subr.mxu0 0.0
        %362 = vmatpush1.msra.mxu0 0.0
        %363 = vmatprep.subr.mxu0 0.0
        %364 = vmatpush1.msra.mxu0 0.0
        %365 = vmatprep.subr.mxu0 0.0
        %366 = vmatpush1.msra.mxu0 0.0
        %367 = vmatprep.subr.mxu0 0.0
        %368 = vmatpush1.msra.mxu0 0.0
        %369 = vmatprep.subr.mxu0 0.0
        %370 = vmatpush1.msra.mxu0 0.0
        %371 = vmatprep.subr.mxu0 0.0
        %372 = vmatpush1.msra.mxu0 0.0
        %373 = vmatprep.subr.mxu0 0.0
        %374 = vmatpush1.msra.mxu0 0.0
        %375 = vmatprep.subr.mxu0 0.0
        %376 = vmatpush1.msra.mxu0 0.0
        %377 = vmatprep.subr.mxu0 0.0
        %378 = vmatpush1.msra.mxu0 0.0
        %379 = vmatprep.subr.mxu0 0.0
        %380 = vmatpush1.msra.mxu0 0.0
        %381 = vmatprep.subr.mxu0 0.0
        %382 = vmatpush1.msra.mxu0 0.0
        %383 = vmatprep.subr.mxu0 0.0
        %384 = vmatpush1.msra.mxu0 0.0
        %385 = vmatprep.subr.mxu0 0.0
        %v386 = vand.u32 %v325, 4294901760
        %387 = vmatpush1.msra.mxu0 %v386
        %388 = vmatprep.subr.mxu0 0.0
        %v389 = vand.u32 %v324, 4294901760
        %390 = vmatpush1.msra.mxu0 %v389
        %391 = vmatprep.subr.mxu0 0.0
        %v392 = vand.u32 %v323, 4294901760
        %393 = vmatpush1.msra.mxu0 %v392
        %394 = vmatprep.subr.mxu0 0.0
        %v395 = vand.u32 %v322, 4294901760
        %396 = vmatpush1.msra.mxu0 %v395
        %397 = vmatprep.subr.mxu0 0.0
        %398 = vmatpush2.msra.mxu0 0.0
        %399 = vmatprep.subr.mxu0 0.0
        %400 = vmatpush2.msra.mxu0 0.0
        %401 = vmatprep.subr.mxu0 0.0
        %402 = vmatpush2.msra.mxu0 0.0
        %403 = vmatprep.subr.mxu0 0.0
        %404 = vmatpush2.msra.mxu0 0.0
        %405 = vmatprep.subr.mxu0 0.0
        %406 = vmatpush2.msra.mxu0 0.0
        %407 = vmatprep.subr.mxu0 0.0
        %408 = vmatpush2.msra.mxu0 0.0
        %409 = vmatprep.subr.mxu0 0.0
        %410 = vmatpush2.msra.mxu0 0.0
        %411 = vmatprep.subr.mxu0 0.0
        %412 = vmatpush2.msra.mxu0 0.0
        %413 = vmatprep.subr.mxu0 0.0
        %414 = vmatpush2.msra.mxu0 0.0
        %415 = vmatprep.subr.mxu0 0.0
        %416 = vmatpush2.msra.mxu0 0.0
        %417 = vmatprep.subr.mxu0 0.0
        %418 = vmatpush2.msra.mxu0 0.0
        %419 = vmatprep.subr.mxu0 0.0
        %420 = vmatpush2.msra.mxu0 0.0
        %421 = vmatprep.subr.mxu0 0.0
        %422 = vmatpush2.msra.mxu0 0.0
        %423 = vmatprep.subr.mxu0 0.0
        %424 = vmatpush2.msra.mxu0 0.0
        %425 = vmatprep.subr.mxu0 0.0
        %426 = vmatpush2.msra.mxu0 0.0
        %427 = vmatprep.subr.mxu0 0.0
        %428 = vmatpush2.msra.mxu0 0.0
        %429 = vmatprep.mubr.f32.mxu0 0.0
        %v430 = vand.u32 %v359, 4294901760
        %v431 = vsub.f32 %v359, %v430
        %v432 = vand.u32 %v431, 4294901760
        %v433 = vsub.f32 %v431, %v432
        %v434 = vand.u32 %v433, 4294901760
        %435 = vmatmul.mubr.f32.gmra.mxu0 %v434
        %v436 = vpop.f32.mrf.mxu0
        %v437 = vadd.f32 %v326, %v436
        %v438 = vpop.f32.mrf.mxu0
        %439 = vdwg.mxu0
        %440 = vmatprep.subr.mxu0 0.0
        %441 = vmatpush1.msra.mxu0 0.0
        %442 = vmatprep.subr.mxu0 0.0
        %443 = vmatpush1.msra.mxu0 0.0
        %444 = vmatprep.subr.mxu0 0.0
        %445 = vmatpush1.msra.mxu0 0.0
        %446 = vmatprep.subr.mxu0 0.0
        %447 = vmatpush1.msra.mxu0 0.0
        %448 = vmatprep.subr.mxu0 0.0
        %449 = vmatpush1.msra.mxu0 0.0
        %450 = vmatprep.subr.mxu0 0.0
        %451 = vmatpush1.msra.mxu0 0.0
        %452 = vmatprep.subr.mxu0 0.0
        %453 = vmatpush1.msra.mxu0 0.0
        %454 = vmatprep.subr.mxu0 0.0
        %455 = vmatpush1.msra.mxu0 0.0
        %456 = vmatprep.subr.mxu0 0.0
        %457 = vmatpush1.msra.mxu0 0.0
        %458 = vmatprep.subr.mxu0 0.0
        %459 = vmatpush1.msra.mxu0 0.0
        %460 = vmatprep.subr.mxu0 0.0
        %461 = vmatpush1.msra.mxu0 0.0
        %462 = vmatprep.subr.mxu0 0.0
        %463 = vmatpush1.msra.mxu0 0.0
        %464 = vmatprep.subr.mxu0 0.0
        %v465 = vand.u32 %v325, 4294901760
        %v466 = vsub.f32 %v325, %v465
        %v467 = vand.u32 %v466, 4294901760
        %v468 = vsub.f32 %v466, %v467
        %v469 = vand.u32 %v468, 4294901760
        %470 = vmatpush1.msra.mxu0 %v469
        %471 = vmatprep.subr.mxu0 0.0
        %v472 = vand.u32 %v324, 4294901760
        %v473 = vsub.f32 %v324, %v472
        %v474 = vand.u32 %v473, 4294901760
        %v475 = vsub.f32 %v473, %v474
        %v476 = vand.u32 %v475, 4294901760
        %477 = vmatpush1.msra.mxu0 %v476
        %478 = vmatprep.subr.mxu0 0.0
        %v479 = vand.u32 %v323, 4294901760
        %v480 = vsub.f32 %v323, %v479
        %v481 = vand.u32 %v480, 4294901760
        %v482 = vsub.f32 %v480, %v481
        %v483 = vand.u32 %v482, 4294901760
        %484 = vmatpush1.msra.mxu0 %v483
        %485 = vmatprep.subr.mxu0 0.0
        %v486 = vand.u32 %v322, 4294901760
        %v487 = vsub.f32 %v322, %v486
        %v488 = vand.u32 %v487, 4294901760
        %v489 = vsub.f32 %v487, %v488
        %v490 = vand.u32 %v489, 4294901760
        %491 = vmatpush1.msra.mxu0 %v490
        %492 = vmatprep.subr.mxu0 0.0
        %493 = vmatpush2.msra.mxu0 0.0
        %494 = vmatprep.subr.mxu0 0.0
        %495 = vmatpush2.msra.mxu0 0.0
        %496 = vmatprep.subr.mxu0 0.0
        %497 = vmatpush2.msra.mxu0 0.0
        %498 = vmatprep.subr.mxu0 0.0
        %499 = vmatpush2.msra.mxu0 0.0
        %500 = vmatprep.subr.mxu0 0.0
        %501 = vmatpush2.msra.mxu0 0.0
        %502 = vmatprep.subr.mxu0 0.0
        %503 = vmatpush2.msra.mxu0 0.0
        %504 = vmatprep.subr.mxu0 0.0
        %505 = vmatpush2.msra.mxu0 0.0
        %506 = vmatprep.subr.mxu0 0.0
        %507 = vmatpush2.msra.mxu0 0.0
        %508 = vmatprep.subr.mxu0 0.0
        %509 = vmatpush2.msra.mxu0 0.0
        %510 = vmatprep.subr.mxu0 0.0
        %511 = vmatpush2.msra.mxu0 0.0
        %512 = vmatprep.subr.mxu0 0.0
        %513 = vmatpush2.msra.mxu0 0.0
        %514 = vmatprep.subr.mxu0 0.0
        %515 = vmatpush2.msra.mxu0 0.0
        %516 = vmatprep.subr.mxu0 0.0
        %517 = vmatpush2.msra.mxu0 0.0
        %518 = vmatprep.subr.mxu0 0.0
        %519 = vmatpush2.msra.mxu0 0.0
        %520 = vmatprep.subr.mxu0 0.0
        %521 = vmatpush2.msra.mxu0 0.0
        %522 = vmatprep.subr.mxu0 0.0
        %523 = vmatpush2.msra.mxu0 0.0
        %524 = vmatprep.mubr.f32.mxu0 0.0
        %v525 = vand.u32 %v359, 4294901760
        %526 = vmatmul.mubr.f32.gmra.mxu0 %v525
        %v527 = vpop.f32.mrf.mxu0
        %v528 = vadd.f32 %v437, %v527
        %v529 = vpop.f32.mrf.mxu0
        %530 = vdwg.mxu0
        %531 = vmatprep.subr.mxu0 0.0
        %532 = vmatpush1.msra.mxu0 0.0
        %533 = vmatprep.subr.mxu0 0.0
        %534 = vmatpush1.msra.mxu0 0.0
        %535 = vmatprep.subr.mxu0 0.0
        %536 = vmatpush1.msra.mxu0 0.0
        %537 = vmatprep.subr.mxu0 0.0
        %538 = vmatpush1.msra.mxu0 0.0
        %539 = vmatprep.subr.mxu0 0.0
        %540 = vmatpush1.msra.mxu0 0.0
        %541 = vmatprep.subr.mxu0 0.0
        %542 = vmatpush1.msra.mxu0 0.0
        %543 = vmatprep.subr.mxu0 0.0
        %544 = vmatpush1.msra.mxu0 0.0
        %545 = vmatprep.subr.mxu0 0.0
        %546 = vmatpush1.msra.mxu0 0.0
        %547 = vmatprep.subr.mxu0 0.0
        %548 = vmatpush1.msra.mxu0 0.0
        %549 = vmatprep.subr.mxu0 0.0
        %550 = vmatpush1.msra.mxu0 0.0
        %551 = vmatprep.subr.mxu0 0.0
        %552 = vmatpush1.msra.mxu0 0.0
        %553 = vmatprep.subr.mxu0 0.0
        %554 = vmatpush1.msra.mxu0 0.0
        %555 = vmatprep.subr.mxu0 0.0
        %v556 = vand.u32 %v325, 4294901760
        %v557 = vsub.f32 %v325, %v556
        %558 = vmatpush1.msra.mxu0 %v557
        %559 = vmatprep.subr.mxu0 0.0
        %v560 = vand.u32 %v324, 4294901760
        %v561 = vsub.f32 %v324, %v560
        %562 = vmatpush1.msra.mxu0 %v561
        %563 = vmatprep.subr.mxu0 0.0
        %v564 = vand.u32 %v323, 4294901760
        %v565 = vsub.f32 %v323, %v564
        %566 = vmatpush1.msra.mxu0 %v565
        %567 = vmatprep.subr.mxu0 0.0
        %v568 = vand.u32 %v322, 4294901760
        %v569 = vsub.f32 %v322, %v568
        %570 = vmatpush1.msra.mxu0 %v569
        %571 = vmatprep.subr.mxu0 0.0
        %572 = vmatpush2.msra.mxu0 0.0
        %573 = vmatprep.subr.mxu0 0.0
        %574 = vmatpush2.msra.mxu0 0.0
        %575 = vmatprep.subr.mxu0 0.0
        %576 = vmatpush2.msra.mxu0 0.0
        %577 = vmatprep.subr.mxu0 0.0
        %578 = vmatpush2.msra.mxu0 0.0
        %579 = vmatprep.subr.mxu0 0.0
        %580 = vmatpush2.msra.mxu0 0.0
        %581 = vmatprep.subr.mxu0 0.0
        %582 = vmatpush2.msra.mxu0 0.0
        %583 = vmatprep.subr.mxu0 0.0
        %584 = vmatpush2.msra.mxu0 0.0
        %585 = vmatprep.subr.mxu0 0.0
        %586 = vmatpush2.msra.mxu0 0.0
        %587 = vmatprep.subr.mxu0 0.0
        %588 = vmatpush2.msra.mxu0 0.0
        %589 = vmatprep.subr.mxu0 0.0
        %590 = vmatpush2.msra.mxu0 0.0
        %591 = vmatprep.subr.mxu0 0.0
        %592 = vmatpush2.msra.mxu0 0.0
        %593 = vmatprep.subr.mxu0 0.0
        %594 = vmatpush2.msra.mxu0 0.0
        %595 = vmatprep.subr.mxu0 0.0
        %596 = vmatpush2.msra.mxu0 0.0
        %597 = vmatprep.subr.mxu0 0.0
        %598 = vmatpush2.msra.mxu0 0.0
        %599 = vmatprep.subr.mxu0 0.0
        %600 = vmatpush2.msra.mxu0 0.0
        %601 = vmatprep.subr.mxu0 0.0
        %602 = vmatpush2.msra.mxu0 0.0
        %603 = vmatprep.mubr.f32.mxu0 0.0
        %v604 = vand.u32 %v359, 4294901760
        %v605 = vsub.f32 %v359, %v604
        %606 = vmatmul.mubr.f32.gmra.mxu0 %v605
        %v607 = vpop.f32.mrf.mxu0
        %v608 = vadd.f32 %v528, %v607
        %v609 = vpop.f32.mrf.mxu0
        %610 = vdwg.mxu0
        %611 = vmatprep.subr.mxu0 0.0
        %612 = vmatpush1.msra.mxu0 0.0
        %613 = vmatprep.subr.mxu0 0.0
        %614 = vmatpush1.msra.mxu0 0.0
        %615 = vmatprep.subr.mxu0 0.0
        %616 = vmatpush1.msra.mxu0 0.0
        %617 = vmatprep.subr.mxu0 0.0
        %618 = vmatpush1.msra.mxu0 0.0
        %619 = vmatprep.subr.mxu0 0.0
        %620 = vmatpush1.msra.mxu0 0.0
        %621 = vmatprep.subr.mxu0 0.0
        %622 = vmatpush1.msra.mxu0 0.0
        %623 = vmatprep.subr.mxu0 0.0
        %624 = vmatpush1.msra.mxu0 0.0
        %625 = vmatprep.subr.mxu0 0.0
        %626 = vmatpush1.msra.mxu0 0.0
        %627 = vmatprep.subr.mxu0 0.0
        %628 = vmatpush1.msra.mxu0 0.0
        %629 = vmatprep.subr.mxu0 0.0
        %630 = vmatpush1.msra.mxu0 0.0
        %631 = vmatprep.subr.mxu0 0.0
        %632 = vmatpush1.msra.mxu0 0.0
        %633 = vmatprep.subr.mxu0 0.0
        %634 = vmatpush1.msra.mxu0 0.0
        %635 = vmatprep.subr.mxu0 0.0
        %v636 = vand.u32 %v325, 4294901760
        %637 = vmatpush1.msra.mxu0 %v636
        %638 = vmatprep.subr.mxu0 0.0
        %v639 = vand.u32 %v324, 4294901760
        %640 = vmatpush1.msra.mxu0 %v639
        %641 = vmatprep.subr.mxu0 0.0
        %v642 = vand.u32 %v323, 4294901760
        %643 = vmatpush1.msra.mxu0 %v642
        %644 = vmatprep.subr.mxu0 0.0
        %v645 = vand.u32 %v322, 4294901760
        %646 = vmatpush1.msra.mxu0 %v645
        %647 = vmatprep.subr.mxu0 0.0
        %648 = vmatpush2.msra.mxu0 0.0
        %649 = vmatprep.subr.mxu0 0.0
        %650 = vmatpush2.msra.mxu0 0.0
        %651 = vmatprep.subr.mxu0 0.0
        %652 = vmatpush2.msra.mxu0 0.0
        %653 = vmatprep.subr.mxu0 0.0
        %654 = vmatpush2.msra.mxu0 0.0
        %655 = vmatprep.subr.mxu0 0.0
        %656 = vmatpush2.msra.mxu0 0.0
        %657 = vmatprep.subr.mxu0 0.0
        %658 = vmatpush2.msra.mxu0 0.0
        %659 = vmatprep.subr.mxu0 0.0
        %660 = vmatpush2.msra.mxu0 0.0
        %661 = vmatprep.subr.mxu0 0.0
        %662 = vmatpush2.msra.mxu0 0.0
        %663 = vmatprep.subr.mxu0 0.0
        %664 = vmatpush2.msra.mxu0 0.0
        %665 = vmatprep.subr.mxu0 0.0
        %666 = vmatpush2.msra.mxu0 0.0
        %667 = vmatprep.subr.mxu0 0.0
        %668 = vmatpush2.msra.mxu0 0.0
        %669 = vmatprep.subr.mxu0 0.0
        %670 = vmatpush2.msra.mxu0 0.0
        %671 = vmatprep.subr.mxu0 0.0
        %672 = vmatpush2.msra.mxu0 0.0
        %673 = vmatprep.subr.mxu0 0.0
        %674 = vmatpush2.msra.mxu0 0.0
        %675 = vmatprep.subr.mxu0 0.0
        %676 = vmatpush2.msra.mxu0 0.0
        %677 = vmatprep.subr.mxu0 0.0
        %678 = vmatpush2.msra.mxu0 0.0
        %679 = vmatprep.mubr.f32.mxu0 0.0
        %v680 = vand.u32 %v359, 4294901760
        %v681 = vsub.f32 %v359, %v680
        %v682 = vand.u32 %v681, 4294901760
        %683 = vmatmul.mubr.f32.gmra.mxu0 %v682
        %v684 = vpop.f32.mrf.mxu0
        %v685 = vadd.f32 %v608, %v684
        %v686 = vpop.f32.mrf.mxu0
        %687 = vdwg.mxu0
        %688 = vmatprep.subr.mxu0 0.0
        %689 = vmatpush1.msra.mxu0 0.0
        %690 = vmatprep.subr.mxu0 0.0
        %691 = vmatpush1.msra.mxu0 0.0
        %692 = vmatprep.subr.mxu0 0.0
        %693 = vmatpush1.msra.mxu0 0.0
        %694 = vmatprep.subr.mxu0 0.0
        %695 = vmatpush1.msra.mxu0 0.0
        %696 = vmatprep.subr.mxu0 0.0
        %697 = vmatpush1.msra.mxu0 0.0
        %698 = vmatprep.subr.mxu0 0.0
        %699 = vmatpush1.msra.mxu0 0.0
        %700 = vmatprep.subr.mxu0 0.0
        %701 = vmatpush1.msra.mxu0 0.0
        %702 = vmatprep.subr.mxu0 0.0
        %703 = vmatpush1.msra.mxu0 0.0
        %704 = vmatprep.subr.mxu0 0.0
        %705 = vmatpush1.msra.mxu0 0.0
        %706 = vmatprep.subr.mxu0 0.0
        %707 = vmatpush1.msra.mxu0 0.0
        %708 = vmatprep.subr.mxu0 0.0
        %709 = vmatpush1.msra.mxu0 0.0
        %710 = vmatprep.subr.mxu0 0.0
        %711 = vmatpush1.msra.mxu0 0.0
        %712 = vmatprep.subr.mxu0 0.0
        %v713 = vand.u32 %v325, 4294901760
        %v714 = vsub.f32 %v325, %v713
        %v715 = vand.u32 %v714, 4294901760
        %716 = vmatpush1.msra.mxu0 %v715
        %717 = vmatprep.subr.mxu0 0.0
        %v718 = vand.u32 %v324, 4294901760
        %v719 = vsub.f32 %v324, %v718
        %v720 = vand.u32 %v719, 4294901760
        %721 = vmatpush1.msra.mxu0 %v720
        %722 = vmatprep.subr.mxu0 0.0
        %v723 = vand.u32 %v323, 4294901760
        %v724 = vsub.f32 %v323, %v723
        %v725 = vand.u32 %v724, 4294901760
        %726 = vmatpush1.msra.mxu0 %v725
        %727 = vmatprep.subr.mxu0 0.0
        %v728 = vand.u32 %v322, 4294901760
        %v729 = vsub.f32 %v322, %v728
        %v730 = vand.u32 %v729, 4294901760
        %731 = vmatpush1.msra.mxu0 %v730
        %732 = vmatprep.subr.mxu0 0.0
        %733 = vmatpush2.msra.mxu0 0.0
        %734 = vmatprep.subr.mxu0 0.0
        %735 = vmatpush2.msra.mxu0 0.0
        %736 = vmatprep.subr.mxu0 0.0
        %737 = vmatpush2.msra.mxu0 0.0
        %738 = vmatprep.subr.mxu0 0.0
        %739 = vmatpush2.msra.mxu0 0.0
        %740 = vmatprep.subr.mxu0 0.0
        %741 = vmatpush2.msra.mxu0 0.0
        %742 = vmatprep.subr.mxu0 0.0
        %743 = vmatpush2.msra.mxu0 0.0
        %744 = vmatprep.subr.mxu0 0.0
        %745 = vmatpush2.msra.mxu0 0.0
        %746 = vmatprep.subr.mxu0 0.0
        %747 = vmatpush2.msra.mxu0 0.0
        %748 = vmatprep.subr.mxu0 0.0
        %749 = vmatpush2.msra.mxu0 0.0
        %750 = vmatprep.subr.mxu0 0.0
        %751 = vmatpush2.msra.mxu0 0.0
        %752 = vmatprep.subr.mxu0 0.0
        %753 = vmatpush2.msra.mxu0 0.0
        %754 = vmatprep.subr.mxu0 0.0
        %755 = vmatpush2.msra.mxu0 0.0
        %756 = vmatprep.subr.mxu0 0.0
        %757 = vmatpush2.msra.mxu0 0.0
        %758 = vmatprep.subr.mxu0 0.0
        %759 = vmatpush2.msra.mxu0 0.0
        %760 = vmatprep.subr.mxu0 0.0
        %761 = vmatpush2.msra.mxu0 0.0
        %762 = vmatprep.subr.mxu0 0.0
        %763 = vmatpush2.msra.mxu0 0.0
        %764 = vmatprep.mubr.f32.mxu0 0.0
        %v765 = vand.u32 %v359, 4294901760
        %766 = vmatmul.mubr.f32.gmra.mxu0 %v765
        %v767 = vpop.f32.mrf.mxu0
        %v768 = vadd.f32 %v685, %v767
        %v769 = vpop.f32.mrf.mxu0
        %770 = vdwg.mxu0
        %771 = vmatprep.subr.mxu0 0.0
        %772 = vmatpush1.msra.mxu0 0.0
        %773 = vmatprep.subr.mxu0 0.0
        %774 = vmatpush1.msra.mxu0 0.0
        %775 = vmatprep.subr.mxu0 0.0
        %776 = vmatpush1.msra.mxu0 0.0
        %777 = vmatprep.subr.mxu0 0.0
        %778 = vmatpush1.msra.mxu0 0.0
        %779 = vmatprep.subr.mxu0 0.0
        %780 = vmatpush1.msra.mxu0 0.0
        %781 = vmatprep.subr.mxu0 0.0
        %782 = vmatpush1.msra.mxu0 0.0
        %783 = vmatprep.subr.mxu0 0.0
        %784 = vmatpush1.msra.mxu0 0.0
        %785 = vmatprep.subr.mxu0 0.0
        %786 = vmatpush1.msra.mxu0 0.0
        %787 = vmatprep.subr.mxu0 0.0
        %788 = vmatpush1.msra.mxu0 0.0
        %789 = vmatprep.subr.mxu0 0.0
        %790 = vmatpush1.msra.mxu0 0.0
        %791 = vmatprep.subr.mxu0 0.0
        %792 = vmatpush1.msra.mxu0 0.0
        %793 = vmatprep.subr.mxu0 0.0
        %794 = vmatpush1.msra.mxu0 0.0
        %795 = vmatprep.subr.mxu0 0.0
        %v796 = vand.u32 %v325, 4294901760
        %797 = vmatpush1.msra.mxu0 %v796
        %798 = vmatprep.subr.mxu0 0.0
        %v799 = vand.u32 %v324, 4294901760
        %800 = vmatpush1.msra.mxu0 %v799
        %801 = vmatprep.subr.mxu0 0.0
        %v802 = vand.u32 %v323, 4294901760
        %803 = vmatpush1.msra.mxu0 %v802
        %804 = vmatprep.subr.mxu0 0.0
        %v805 = vand.u32 %v322, 4294901760
        %806 = vmatpush1.msra.mxu0 %v805
        %807 = vmatprep.subr.mxu0 0.0
        %808 = vmatpush2.msra.mxu0 0.0
        %809 = vmatprep.subr.mxu0 0.0
        %810 = vmatpush2.msra.mxu0 0.0
        %811 = vmatprep.subr.mxu0 0.0
        %812 = vmatpush2.msra.mxu0 0.0
        %813 = vmatprep.subr.mxu0 0.0
        %814 = vmatpush2.msra.mxu0 0.0
        %815 = vmatprep.subr.mxu0 0.0
        %816 = vmatpush2.msra.mxu0 0.0
        %817 = vmatprep.subr.mxu0 0.0
        %818 = vmatpush2.msra.mxu0 0.0
        %819 = vmatprep.subr.mxu0 0.0
        %820 = vmatpush2.msra.mxu0 0.0
        %821 = vmatprep.subr.mxu0 0.0
        %822 = vmatpush2.msra.mxu0 0.0
        %823 = vmatprep.subr.mxu0 0.0
        %824 = vmatpush2.msra.mxu0 0.0
        %825 = vmatprep.subr.mxu0 0.0
        %826 = vmatpush2.msra.mxu0 0.0
        %827 = vmatprep.subr.mxu0 0.0
        %828 = vmatpush2.msra.mxu0 0.0
        %829 = vmatprep.subr.mxu0 0.0
        %830 = vmatpush2.msra.mxu0 0.0
        %831 = vmatprep.subr.mxu0 0.0
        %832 = vmatpush2.msra.mxu0 0.0
        %833 = vmatprep.subr.mxu0 0.0
        %834 = vmatpush2.msra.mxu0 0.0
        %835 = vmatprep.subr.mxu0 0.0
        %836 = vmatpush2.msra.mxu0 0.0
        %837 = vmatprep.subr.mxu0 0.0
        %838 = vmatpush2.msra.mxu0 0.0
        %839 = vmatprep.mubr.f32.mxu0 0.0
        %v840 = vand.u32 %v359, 4294901760
        %841 = vmatmul.mubr.f32.gmra.mxu0 %v840
        %v842 = vpop.f32.mrf.mxu0
        %v843 = vadd.f32 %v768, %v842
        %v844 = vpop.f32.mrf.mxu0
        %845 = vdwg.mxu0
        %v846 = vmax.f32 %v843, 0.0
        %v847 = vld [vmem:[%s3] sm:$0xff]
        %v848 = vld [vmem:[%s3 + $0x8] sm:$0xff]
        %v849 = vld [vmem:[%s4] sm:$0x1]
        %vm850 = vcmask 130048
        %v852 = vsel %vm850, %v846, 0
        %854 = vmatprep.subr.mxu0 0.0
        %855 = vmatpush1.msra.mxu0 0.0
        %856 = vmatprep.subr.mxu0 0.0
        %857 = vmatpush1.msra.mxu0 0.0
        %858 = vmatprep.subr.mxu0 0.0
        %859 = vmatpush1.msra.mxu0 0.0
        %860 = vmatprep.subr.mxu0 0.0
        %861 = vmatpush1.msra.mxu0 0.0
        %862 = vmatprep.subr.mxu0 0.0
        %863 = vmatpush1.msra.mxu0 0.0
        %864 = vmatprep.subr.mxu0 0.0
        %865 = vmatpush1.msra.mxu0 0.0
        %866 = vmatprep.subr.mxu0 0.0
        %867 = vmatpush1.msra.mxu0 0.0
        %868 = vmatprep.subr.mxu0 0.0
        %869 = vmatpush1.msra.mxu0 0.0
        %870 = vmatprep.subr.mxu0 0.0
        %871 = vmatpush1.msra.mxu0 0.0
        %872 = vmatprep.subr.mxu0 0.0
        %873 = vmatpush1.msra.mxu0 0.0
        %874 = vmatprep.subr.mxu0 0.0
        %875 = vmatpush1.msra.mxu0 0.0
        %876 = vmatprep.subr.mxu0 0.0
        %877 = vmatpush1.msra.mxu0 0.0
        %878 = vmatprep.subr.mxu0 0.0
        %879 = vmatpush1.msra.mxu0 0.0
        %880 = vmatprep.subr.mxu0 0.0
        %881 = vmatpush1.msra.mxu0 0.0
        %882 = vmatprep.subr.mxu0 0.0
        %v883 = vand.u32 %v848, 4294901760
        %884 = vmatpush1.msra.mxu0 %v883
        %885 = vmatprep.subr.mxu0 0.0
        %v886 = vand.u32 %v847, 4294901760
        %887 = vmatpush1.msra.mxu0 %v886
        %888 = vmatprep.subr.mxu0 0.0
        %889 = vmatpush2.msra.mxu0 0.0
        %890 = vmatprep.subr.mxu0 0.0
        %891 = vmatpush2.msra.mxu0 0.0
        %892 = vmatprep.subr.mxu0 0.0
        %893 = vmatpush2.msra.mxu0 0.0
        %894 = vmatprep.subr.mxu0 0.0
        %895 = vmatpush2.msra.mxu0 0.0
        %896 = vmatprep.subr.mxu0 0.0
        %897 = vmatpush2.msra.mxu0 0.0
        %898 = vmatprep.subr.mxu0 0.0
        %899 = vmatpush2.msra.mxu0 0.0
        %900 = vmatprep.subr.mxu0 0.0
        %901 = vmatpush2.msra.mxu0 0.0
        %902 = vmatprep.subr.mxu0 0.0
        %903 = vmatpush2.msra.mxu0 0.0
        %904 = vmatprep.subr.mxu0 0.0
        %905 = vmatpush2.msra.mxu0 0.0
        %906 = vmatprep.subr.mxu0 0.0
        %907 = vmatpush2.msra.mxu0 0.0
        %908 = vmatprep.subr.mxu0 0.0
        %909 = vmatpush2.msra.mxu0 0.0
        %910 = vmatprep.subr.mxu0 0.0
        %911 = vmatpush2.msra.mxu0 0.0
        %912 = vmatprep.subr.mxu0 0.0
        %913 = vmatpush2.msra.mxu0 0.0
        %914 = vmatprep.subr.mxu0 0.0
        %915 = vmatpush2.msra.mxu0 0.0
        %916 = vmatprep.subr.mxu0 0.0
        %917 = vmatpush2.msra.mxu0 0.0
        %918 = vmatprep.subr.mxu0 0.0
        %919 = vmatpush2.msra.mxu0 0.0
        %920 = vmatprep.mubr.f32.mxu0 0.0
        %v921 = vand.u32 %v852, 4294901760
        %v922 = vsub.f32 %v852, %v921
        %v923 = vand.u32 %v922, 4294901760
        %v924 = vsub.f32 %v922, %v923
        %v925 = vand.u32 %v924, 4294901760
        %926 = vmatmul.mubr.f32.gmra.mxu0 %v925
        %v927 = vpop.f32.mrf.mxu0
        %v928 = vadd.f32 %v849, %v927
        %v929 = vpop.f32.mrf.mxu0
        %930 = vdwg.mxu0
        %931 = vmatprep.subr.mxu0 0.0
        %932 = vmatpush1.msra.mxu0 0.0
        %933 = vmatprep.subr.mxu0 0.0
        %934 = vmatpush1.msra.mxu0 0.0
        %935 = vmatprep.subr.mxu0 0.0
        %936 = vmatpush1.msra.mxu0 0.0
        %937 = vmatprep.subr.mxu0 0.0
        %938 = vmatpush1.msra.mxu0 0.0
        %939 = vmatprep.subr.mxu0 0.0
        %940 = vmatpush1.msra.mxu0 0.0
        %941 = vmatprep.subr.mxu0 0.0
        %942 = vmatpush1.msra.mxu0 0.0
        %943 = vmatprep.subr.mxu0 0.0
        %944 = vmatpush1.msra.mxu0 0.0
        %945 = vmatprep.subr.mxu0 0.0
        %946 = vmatpush1.msra.mxu0 0.0
        %947 = vmatprep.subr.mxu0 0.0
        %948 = vmatpush1.msra.mxu0 0.0
        %949 = vmatprep.subr.mxu0 0.0
        %950 = vmatpush1.msra.mxu0 0.0
        %951 = vmatprep.subr.mxu0 0.0
        %952 = vmatpush1.msra.mxu0 0.0
        %953 = vmatprep.subr.mxu0 0.0
        %954 = vmatpush1.msra.mxu0 0.0
        %955 = vmatprep.subr.mxu0 0.0
        %956 = vmatpush1.msra.mxu0 0.0
        %957 = vmatprep.subr.mxu0 0.0
        %958 = vmatpush1.msra.mxu0 0.0
        %959 = vmatprep.subr.mxu0 0.0
        %v960 = vand.u32 %v848, 4294901760
        %v961 = vsub.f32 %v848, %v960
        %v962 = vand.u32 %v961, 4294901760
        %v963 = vsub.f32 %v961, %v962
        %v964 = vand.u32 %v963, 4294901760
        %965 = vmatpush1.msra.mxu0 %v964
        %966 = vmatprep.subr.mxu0 0.0
        %v967 = vand.u32 %v847, 4294901760
        %v968 = vsub.f32 %v847, %v967
        %v969 = vand.u32 %v968, 4294901760
        %v970 = vsub.f32 %v968, %v969
        %v971 = vand.u32 %v970, 4294901760
        %972 = vmatpush1.msra.mxu0 %v971
        %973 = vmatprep.subr.mxu0 0.0
        %974 = vmatpush2.msra.mxu0 0.0
        %975 = vmatprep.subr.mxu0 0.0
        %976 = vmatpush2.msra.mxu0 0.0
        %977 = vmatprep.subr.mxu0 0.0
        %978 = vmatpush2.msra.mxu0 0.0
        %979 = vmatprep.subr.mxu0 0.0
        %980 = vmatpush2.msra.mxu0 0.0
        %981 = vmatprep.subr.mxu0 0.0
        %982 = vmatpush2.msra.mxu0 0.0
        %983 = vmatprep.subr.mxu0 0.0
        %984 = vmatpush2.msra.mxu0 0.0
        %985 = vmatprep.subr.mxu0 0.0
        %986 = vmatpush2.msra.mxu0 0.0
        %987 = vmatprep.subr.mxu0 0.0
        %988 = vmatpush2.msra.mxu0 0.0
        %989 = vmatprep.subr.mxu0 0.0
        %990 = vmatpush2.msra.mxu0 0.0
        %991 = vmatprep.subr.mxu0 0.0
        %992 = vmatpush2.msra.mxu0 0.0
        %993 = vmatprep.subr.mxu0 0.0
        %994 = vmatpush2.msra.mxu0 0.0
        %995 = vmatprep.subr.mxu0 0.0
        %996 = vmatpush2.msra.mxu0 0.0
        %997 = vmatprep.subr.mxu0 0.0
        %998 = vmatpush2.msra.mxu0 0.0
        %999 = vmatprep.subr.mxu0 0.0
        %1000 = vmatpush2.msra.mxu0 0.0
        %1001 = vmatprep.subr.mxu0 0.0
        %1002 = vmatpush2.msra.mxu0 0.0
        %1003 = vmatprep.subr.mxu0 0.0
        %1004 = vmatpush2.msra.mxu0 0.0
        %1005 = vmatprep.mubr.f32.mxu0 0.0
        %v1006 = vand.u32 %v852, 4294901760
        %1007 = vmatmul.mubr.f32.gmra.mxu0 %v1006
        %v1008 = vpop.f32.mrf.mxu0
        %v1009 = vadd.f32 %v928, %v1008
        %v1010 = vpop.f32.mrf.mxu0
        %1011 = vdwg.mxu0
        %1012 = vmatprep.subr.mxu0 0.0
        %1013 = vmatpush1.msra.mxu0 0.0
        %1014 = vmatprep.subr.mxu0 0.0
        %1015 = vmatpush1.msra.mxu0 0.0
        %1016 = vmatprep.subr.mxu0 0.0
        %1017 = vmatpush1.msra.mxu0 0.0
        %1018 = vmatprep.subr.mxu0 0.0
        %1019 = vmatpush1.msra.mxu0 0.0
        %1020 = vmatprep.subr.mxu0 0.0
        %1021 = vmatpush1.msra.mxu0 0.0
        %1022 = vmatprep.subr.mxu0 0.0
        %1023 = vmatpush1.msra.mxu0 0.0
        %1024 = vmatprep.subr.mxu0 0.0
        %1025 = vmatpush1.msra.mxu0 0.0
        %1026 = vmatprep.subr.mxu0 0.0
        %1027 = vmatpush1.msra.mxu0 0.0
        %1028 = vmatprep.subr.mxu0 0.0
        %1029 = vmatpush1.msra.mxu0 0.0
        %1030 = vmatprep.subr.mxu0 0.0
        %1031 = vmatpush1.msra.mxu0 0.0
        %1032 = vmatprep.subr.mxu0 0.0
        %1033 = vmatpush1.msra.mxu0 0.0
        %1034 = vmatprep.subr.mxu0 0.0
        %1035 = vmatpush1.msra.mxu0 0.0
        %1036 = vmatprep.subr.mxu0 0.0
        %1037 = vmatpush1.msra.mxu0 0.0
        %1038 = vmatprep.subr.mxu0 0.0
        %1039 = vmatpush1.msra.mxu0 0.0
        %1040 = vmatprep.subr.mxu0 0.0
        %v1041 = vand.u32 %v848, 4294901760
        %v1042 = vsub.f32 %v848, %v1041
        %1043 = vmatpush1.msra.mxu0 %v1042
        %1044 = vmatprep.subr.mxu0 0.0
        %v1045 = vand.u32 %v847, 4294901760
        %v1046 = vsub.f32 %v847, %v1045
        %1047 = vmatpush1.msra.mxu0 %v1046
        %1048 = vmatprep.subr.mxu0 0.0
        %1049 = vmatpush2.msra.mxu0 0.0
        %1050 = vmatprep.subr.mxu0 0.0
        %1051 = vmatpush2.msra.mxu0 0.0
        %1052 = vmatprep.subr.mxu0 0.0
        %1053 = vmatpush2.msra.mxu0 0.0
        %1054 = vmatprep.subr.mxu0 0.0
        %1055 = vmatpush2.msra.mxu0 0.0
        %1056 = vmatprep.subr.mxu0 0.0
        %1057 = vmatpush2.msra.mxu0 0.0
        %1058 = vmatprep.subr.mxu0 0.0
        %1059 = vmatpush2.msra.mxu0 0.0
        %1060 = vmatprep.subr.mxu0 0.0
        %1061 = vmatpush2.msra.mxu0 0.0
        %1062 = vmatprep.subr.mxu0 0.0
        %1063 = vmatpush2.msra.mxu0 0.0
        %1064 = vmatprep.subr.mxu0 0.0
        %1065 = vmatpush2.msra.mxu0 0.0
        %1066 = vmatprep.subr.mxu0 0.0
        %1067 = vmatpush2.msra.mxu0 0.0
        %1068 = vmatprep.subr.mxu0 0.0
        %1069 = vmatpush2.msra.mxu0 0.0
        %1070 = vmatprep.subr.mxu0 0.0
        %1071 = vmatpush2.msra.mxu0 0.0
        %1072 = vmatprep.subr.mxu0 0.0
        %1073 = vmatpush2.msra.mxu0 0.0
        %1074 = vmatprep.subr.mxu0 0.0
        %1075 = vmatpush2.msra.mxu0 0.0
        %1076 = vmatprep.subr.mxu0 0.0
        %1077 = vmatpush2.msra.mxu0 0.0
        %1078 = vmatprep.subr.mxu0 0.0
        %1079 = vmatpush2.msra.mxu0 0.0
        %1080 = vmatprep.mubr.f32.mxu0 0.0
        %v1081 = vand.u32 %v852, 4294901760
        %v1082 = vsub.f32 %v852, %v1081
        %1083 = vmatmul.mubr.f32.gmra.mxu0 %v1082
        %v1084 = vpop.f32.mrf.mxu0
        %v1085 = vadd.f32 %v1009, %v1084
        %v1086 = vpop.f32.mrf.mxu0
        %1087 = vdwg.mxu0
        %1088 = vmatprep.subr.mxu0 0.0
        %1089 = vmatpush1.msra.mxu0 0.0
        %1090 = vmatprep.subr.mxu0 0.0
        %1091 = vmatpush1.msra.mxu0 0.0
        %1092 = vmatprep.subr.mxu0 0.0
        %1093 = vmatpush1.msra.mxu0 0.0
        %1094 = vmatprep.subr.mxu0 0.0
        %1095 = vmatpush1.msra.mxu0 0.0
        %1096 = vmatprep.subr.mxu0 0.0
        %1097 = vmatpush1.msra.mxu0 0.0
        %1098 = vmatprep.subr.mxu0 0.0
        %1099 = vmatpush1.msra.mxu0 0.0
        %1100 = vmatprep.subr.mxu0 0.0
        %1101 = vmatpush1.msra.mxu0 0.0
        %1102 = vmatprep.subr.mxu0 0.0
        %1103 = vmatpush1.msra.mxu0 0.0
        %1104 = vmatprep.subr.mxu0 0.0
        %1105 = vmatpush1.msra.mxu0 0.0
        %1106 = vmatprep.subr.mxu0 0.0
        %1107 = vmatpush1.msra.mxu0 0.0
        %1108 = vmatprep.subr.mxu0 0.0
        %1109 = vmatpush1.msra.mxu0 0.0
        %1110 = vmatprep.subr.mxu0 0.0
        %1111 = vmatpush1.msra.mxu0 0.0
        %1112 = vmatprep.subr.mxu0 0.0
        %1113 = vmatpush1.msra.mxu0 0.0
        %1114 = vmatprep.subr.mxu0 0.0
        %1115 = vmatpush1.msra.mxu0 0.0
        %1116 = vmatprep.subr.mxu0 0.0
        %v1117 = vand.u32 %v848, 4294901760
        %1118 = vmatpush1.msra.mxu0 %v1117
        %1119 = vmatprep.subr.mxu0 0.0
        %v1120 = vand.u32 %v847, 4294901760
        %1121 = vmatpush1.msra.mxu0 %v1120
        %1122 = vmatprep.subr.mxu0 0.0
        %1123 = vmatpush2.msra.mxu0 0.0
        %1124 = vmatprep.subr.mxu0 0.0
        %1125 = vmatpush2.msra.mxu0 0.0
        %1126 = vmatprep.subr.mxu0 0.0
        %1127 = vmatpush2.msra.mxu0 0.0
        %1128 = vmatprep.subr.mxu0 0.0
        %1129 = vmatpush2.msra.mxu0 0.0
        %1130 = vmatprep.subr.mxu0 0.0
        %1131 = vmatpush2.msra.mxu0 0.0
        %1132 = vmatprep.subr.mxu0 0.0
        %1133 = vmatpush2.msra.mxu0 0.0
        %1134 = vmatprep.subr.mxu0 0.0
        %1135 = vmatpush2.msra.mxu0 0.0
        %1136 = vmatprep.subr.mxu0 0.0
        %1137 = vmatpush2.msra.mxu0 0.0
        %1138 = vmatprep.subr.mxu0 0.0
        %1139 = vmatpush2.msra.mxu0 0.0
        %1140 = vmatprep.subr.mxu0 0.0
        %1141 = vmatpush2.msra.mxu0 0.0
        %1142 = vmatprep.subr.mxu0 0.0
        %1143 = vmatpush2.msra.mxu0 0.0
        %1144 = vmatprep.subr.mxu0 0.0
        %1145 = vmatpush2.msra.mxu0 0.0
        %1146 = vmatprep.subr.mxu0 0.0
        %1147 = vmatpush2.msra.mxu0 0.0
        %1148 = vmatprep.subr.mxu0 0.0
        %1149 = vmatpush2.msra.mxu0 0.0
        %1150 = vmatprep.subr.mxu0 0.0
        %1151 = vmatpush2.msra.mxu0 0.0
        %1152 = vmatprep.subr.mxu0 0.0
        %1153 = vmatpush2.msra.mxu0 0.0
        %1154 = vmatprep.mubr.f32.mxu0 0.0
        %v1155 = vand.u32 %v852, 4294901760
        %v1156 = vsub.f32 %v852, %v1155
        %v1157 = vand.u32 %v1156, 4294901760
        %1158 = vmatmul.mubr.f32.gmra.mxu0 %v1157
        %v1159 = vpop.f32.mrf.mxu0
        %v1160 = vadd.f32 %v1085, %v1159
        %v1161 = vpop.f32.mrf.mxu0
        %1162 = vdwg.mxu0
        %1163 = vmatprep.subr.mxu0 0.0
        %1164 = vmatpush1.msra.mxu0 0.0
        %1165 = vmatprep.subr.mxu0 0.0
        %1166 = vmatpush1.msra.mxu0 0.0
        %1167 = vmatprep.subr.mxu0 0.0
        %1168 = vmatpush1.msra.mxu0 0.0
        %1169 = vmatprep.subr.mxu0 0.0
        %1170 = vmatpush1.msra.mxu0 0.0
        %1171 = vmatprep.subr.mxu0 0.0
        %1172 = vmatpush1.msra.mxu0 0.0
        %1173 = vmatprep.subr.mxu0 0.0
        %1174 = vmatpush1.msra.mxu0 0.0
        %1175 = vmatprep.subr.mxu0 0.0
        %1176 = vmatpush1.msra.mxu0 0.0
        %1177 = vmatprep.subr.mxu0 0.0
        %1178 = vmatpush1.msra.mxu0 0.0
        %1179 = vmatprep.subr.mxu0 0.0
        %1180 = vmatpush1.msra.mxu0 0.0
        %1181 = vmatprep.subr.mxu0 0.0
        %1182 = vmatpush1.msra.mxu0 0.0
        %1183 = vmatprep.subr.mxu0 0.0
        %1184 = vmatpush1.msra.mxu0 0.0
        %1185 = vmatprep.subr.mxu0 0.0
        %1186 = vmatpush1.msra.mxu0 0.0
        %1187 = vmatprep.subr.mxu0 0.0
        %1188 = vmatpush1.msra.mxu0 0.0
        %1189 = vmatprep.subr.mxu0 0.0
        %1190 = vmatpush1.msra.mxu0 0.0
        %1191 = vmatprep.subr.mxu0 0.0
        %v1192 = vand.u32 %v848, 4294901760
        %v1193 = vsub.f32 %v848, %v1192
        %v1194 = vand.u32 %v1193, 4294901760
        %1195 = vmatpush1.msra.mxu0 %v1194
        %1196 = vmatprep.subr.mxu0 0.0
        %v1197 = vand.u32 %v847, 4294901760
        %v1198 = vsub.f32 %v847, %v1197
        %v1199 = vand.u32 %v1198, 4294901760
        %1200 = vmatpush1.msra.mxu0 %v1199
        %1201 = vmatprep.subr.mxu0 0.0
        %1202 = vmatpush2.msra.mxu0 0.0
        %1203 = vmatprep.subr.mxu0 0.0
        %1204 = vmatpush2.msra.mxu0 0.0
        %1205 = vmatprep.subr.mxu0 0.0
        %1206 = vmatpush2.msra.mxu0 0.0
        %1207 = vmatprep.subr.mxu0 0.0
        %1208 = vmatpush2.msra.mxu0 0.0
        %1209 = vmatprep.subr.mxu0 0.0
        %1210 = vmatpush2.msra.mxu0 0.0
        %1211 = vmatprep.subr.mxu0 0.0
        %1212 = vmatpush2.msra.mxu0 0.0
        %1213 = vmatprep.subr.mxu0 0.0
        %1214 = vmatpush2.msra.mxu0 0.0
        %1215 = vmatprep.subr.mxu0 0.0
        %1216 = vmatpush2.msra.mxu0 0.0
        %1217 = vmatprep.subr.mxu0 0.0
        %1218 = vmatpush2.msra.mxu0 0.0
        %1219 = vmatprep.subr.mxu0 0.0
        %1220 = vmatpush2.msra.mxu0 0.0
        %1221 = vmatprep.subr.mxu0 0.0
        %1222 = vmatpush2.msra.mxu0 0.0
        %1223 = vmatprep.subr.mxu0 0.0
        %1224 = vmatpush2.msra.mxu0 0.0
        %1225 = vmatprep.subr.mxu0 0.0
        %1226 = vmatpush2.msra.mxu0 0.0
        %1227 = vmatprep.subr.mxu0 0.0
        %1228 = vmatpush2.msra.mxu0 0.0
        %1229 = vmatprep.subr.mxu0 0.0
        %1230 = vmatpush2.msra.mxu0 0.0
        %1231 = vmatprep.subr.mxu0 0.0
        %1232 = vmatpush2.msra.mxu0 0.0
        %1233 = vmatprep.mubr.f32.mxu0 0.0
        %v1234 = vand.u32 %v852, 4294901760
        %1235 = vmatmul.mubr.f32.gmra.mxu0 %v1234
        %v1236 = vpop.f32.mrf.mxu0
        %v1237 = vadd.f32 %v1160, %v1236
        %v1238 = vpop.f32.mrf.mxu0
        %1239 = vdwg.mxu0
        %1240 = vmatprep.subr.mxu0 0.0
        %1241 = vmatpush1.msra.mxu0 0.0
        %1242 = vmatprep.subr.mxu0 0.0
        %1243 = vmatpush1.msra.mxu0 0.0
        %1244 = vmatprep.subr.mxu0 0.0
        %1245 = vmatpush1.msra.mxu0 0.0
        %1246 = vmatprep.subr.mxu0 0.0
        %1247 = vmatpush1.msra.mxu0 0.0
        %1248 = vmatprep.subr.mxu0 0.0
        %1249 = vmatpush1.msra.mxu0 0.0
        %1250 = vmatprep.subr.mxu0 0.0
        %1251 = vmatpush1.msra.mxu0 0.0
        %1252 = vmatprep.subr.mxu0 0.0
        %1253 = vmatpush1.msra.mxu0 0.0
        %1254 = vmatprep.subr.mxu0 0.0
        %1255 = vmatpush1.msra.mxu0 0.0
        %1256 = vmatprep.subr.mxu0 0.0
        %1257 = vmatpush1.msra.mxu0 0.0
        %1258 = vmatprep.subr.mxu0 0.0
        %1259 = vmatpush1.msra.mxu0 0.0
        %1260 = vmatprep.subr.mxu0 0.0
        %1261 = vmatpush1.msra.mxu0 0.0
        %1262 = vmatprep.subr.mxu0 0.0
        %1263 = vmatpush1.msra.mxu0 0.0
        %1264 = vmatprep.subr.mxu0 0.0
        %1265 = vmatpush1.msra.mxu0 0.0
        %1266 = vmatprep.subr.mxu0 0.0
        %1267 = vmatpush1.msra.mxu0 0.0
        %1268 = vmatprep.subr.mxu0 0.0
        %v1269 = vand.u32 %v848, 4294901760
        %1270 = vmatpush1.msra.mxu0 %v1269
        %1271 = vmatprep.subr.mxu0 0.0
        %v1272 = vand.u32 %v847, 4294901760
        %1273 = vmatpush1.msra.mxu0 %v1272
        %1274 = vmatprep.subr.mxu0 0.0
        %1275 = vmatpush2.msra.mxu0 0.0
        %1276 = vmatprep.subr.mxu0 0.0
        %1277 = vmatpush2.msra.mxu0 0.0
        %1278 = vmatprep.subr.mxu0 0.0
        %1279 = vmatpush2.msra.mxu0 0.0
        %1280 = vmatprep.subr.mxu0 0.0
        %1281 = vmatpush2.msra.mxu0 0.0
        %1282 = vmatprep.subr.mxu0 0.0
        %1283 = vmatpush2.msra.mxu0 0.0
        %1284 = vmatprep.subr.mxu0 0.0
        %1285 = vmatpush2.msra.mxu0 0.0
        %1286 = vmatprep.subr.mxu0 0.0
        %1287 = vmatpush2.msra.mxu0 0.0
        %1288 = vmatprep.subr.mxu0 0.0
        %1289 = vmatpush2.msra.mxu0 0.0
        %1290 = vmatprep.subr.mxu0 0.0
        %1291 = vmatpush2.msra.mxu0 0.0
        %1292 = vmatprep.subr.mxu0 0.0
        %1293 = vmatpush2.msra.mxu0 0.0
        %1294 = vmatprep.subr.mxu0 0.0
        %1295 = vmatpush2.msra.mxu0 0.0
        %1296 = vmatprep.subr.mxu0 0.0
        %1297 = vmatpush2.msra.mxu0 0.0
        %1298 = vmatprep.subr.mxu0 0.0
        %1299 = vmatpush2.msra.mxu0 0.0
        %1300 = vmatprep.subr.mxu0 0.0
        %1301 = vmatpush2.msra.mxu0 0.0
        %1302 = vmatprep.subr.mxu0 0.0
        %1303 = vmatpush2.msra.mxu0 0.0
        %1304 = vmatprep.subr.mxu0 0.0
        %1305 = vmatpush2.msra.mxu0 0.0
        %1306 = vmatprep.mubr.f32.mxu0 0.0
        %v1307 = vand.u32 %v852, 4294901760
        %1308 = vmatmul.mubr.f32.gmra.mxu0 %v1307
        %v1309 = vpop.f32.mrf.mxu0
        %v1310 = vadd.f32 %v1237, %v1309
        %v1311 = vpop.f32.mrf.mxu0
        %1312 = vdwg.mxu0
        %v1313 = vxor.u32 %v1310, 2147483648
        %v1314 = vmul.f32 %v1313, 1.442695
        %v1315 = vpow.pop %v1314
        %v1316 = vadd.f32 %v1315, 1.0
        %v1317 = vrcp.pop %v1316
        %v1318 = vmul.f32 1.0, %v1317
        %v1319 = vld [vmem:[%s5] sm:$0xff]
        %v1320 = vld [vmem:[%s5 + $0x8] sm:$0xff]
        %v1321 = vld [vmem:[%s5 + $0x10] sm:$0xff]
        %v1322 = vld [vmem:[%s5 + $0x18] sm:$0xff]
        %1324 = vset.pattern.permute.xlu0 0
        %1325 = vperm.xlu0 %1324, %v1319
        %v1326 = vpop.permute.xlu0 %1325
        %1329 = vset.pattern.permute.xlu0 0
        %1330 = vperm.xlu0 %1329, %v1320
        %v1331 = vpop.permute.xlu0 %1330
        %1334 = vset.pattern.permute.xlu0 0
        %1335 = vperm.xlu0 %1334, %v1321
        %v1336 = vpop.permute.xlu0 %1335
        %1339 = vset.pattern.permute.xlu0 0
        %1340 = vperm.xlu0 %1339, %v1322
        %v1341 = vpop.permute.xlu0 %1340
        %v1343 = vmul.f32 %v298, %v1326
        %v1344 = vmul.f32 %v299, %v1326
        %v1345 = vmul.f32 %v300, %v1331
        %v1346 = vmul.f32 %v301, %v1331
        %v1347 = vmul.f32 %v302, %v1336
        %v1348 = vmul.f32 %v303, %v1336
        %v1349 = vmul.f32 %v304, %v1341
        %v1350 = vmul.f32 %v305, %v1341
        %v1351 = vadd.f32 %v1343, %v1345
        %v1352 = vadd.f32 %v1351, %v1347
        %v1353 = vadd.f32 %v1352, %v1349
        %v1354 = vrot.slane %v1353, 4
        %v1355 = vadd.f32 %v1353, %v1354
        %v1356 = vrot.slane %v1355, 2
        %v1357 = vadd.f32 %v1355, %v1356
        %v1358 = vrot.slane %v1357, 1
        %v1359 = vadd.f32 %v1357, %v1358
        %v1360 = vadd.f32 %v1344, %v1346
        %v1361 = vadd.f32 %v1360, %v1348
        %v1362 = vadd.f32 %v1361, %v1350
        %v1363 = vrot.slane %v1362, 4
        %v1364 = vadd.f32 %v1362, %v1363
        %v1365 = vrot.slane %v1364, 2
        %v1366 = vadd.f32 %v1364, %v1365
        %v1367 = vrot.slane %v1366, 1
        %v1368 = vadd.f32 %v1366, %v1367
        %s1369 = sld [smem:[#allocation2]]
        %v1370 = vstv %s1369
        %v1371 = vadd.f32 %v1359, %v1370
        %v1372 = vadd.f32 %v1368, %v1370
        %v1373 = vxor.u32 %v1371, 2147483648
        %v1374 = vxor.u32 %v1372, 2147483648
        %v1375 = vmul.f32 %v1373, 1.442695
        %v1376 = vpow.pop %v1375
        %v1377 = vmul.f32 %v1374, 1.442695
        %v1378 = vpow.pop %v1377
        %v1379 = vadd.f32 %v1376, 1.0
        %v1380 = vadd.f32 %v1378, 1.0
        %v1381 = vrcp.pop %v1379
        %v1382 = vmul.f32 1.0, %v1381
        %v1383 = vrcp.pop %v1380
        %v1384 = vmul.f32 1.0, %v1383
        %v1385 = vlaneseq
        %v1386 = vshrl.u32 %v1385, 7
        %v1387 = vsub.s32 0, %v1386
        %v1388 = vrot.slane %v1318, %v1387
        %1390 = vbcast.lane.b32.xlu0 %v1388, 256
        %v1391 = vpop.permute.xlu0 %1390
        %s1393 = sor.u32 256, 8
        %1394 = vbcast.lane.b32.xlu0 %v1388, %s1393
        %v1395 = vpop.permute.xlu0 %1394
        %s1397 = sor.u32 256, 16
        %1398 = vbcast.lane.b32.xlu0 %v1388, %s1397
        %v1399 = vpop.permute.xlu0 %1398
        %s1401 = sor.u32 256, 24
        %1402 = vbcast.lane.b32.xlu0 %v1388, %s1401
        %v1403 = vpop.permute.xlu0 %1402
        %v1404 = vadd.f32 %v1391, %v1382
        %v1405 = vadd.f32 %v1391, %v1384
        %v1406 = vadd.f32 %v1395, %v1382
        %v1407 = vadd.f32 %v1395, %v1384
        %v1408 = vadd.f32 %v1399, %v1382
        %v1409 = vadd.f32 %v1399, %v1384
        %v1410 = vadd.f32 %v1403, %v1382
        %v1411 = vadd.f32 %v1403, %v1384
        %v1412 = vmul.f32 %v298, %v1404
        %v1413 = vmul.f32 %v299, %v1405
        %v1414 = vmul.f32 %v300, %v1406
        %v1415 = vmul.f32 %v301, %v1407
        %v1416 = vmul.f32 %v302, %v1408
        %v1417 = vmul.f32 %v303, %v1409
        %v1418 = vmul.f32 %v304, %v1410
        %v1419 = vmul.f32 %v305, %v1411
        %1420 = vst [vmem:[%s297] sm:$0xff] %v1412
        %1421 = vst [vmem:[%s297 + $0x8] sm:$0xff] %v1413
        %1422 = vst [vmem:[%s297 + $0x10] sm:$0xff] %v1414
        %1423 = vst [vmem:[%s297 + $0x18] sm:$0xff] %v1415
        %1424 = vst [vmem:[%s297 + $0x20] sm:$0xff] %v1416
        %1425 = vst [vmem:[%s297 + $0x28] sm:$0xff] %v1417
        %1426 = vst [vmem:[%s297 + $0x30] sm:$0xff] %v1418
        %1427 = vst [vmem:[%s297 + $0x38] sm:$0xff] %v1419
        %s1428 = sand.u32 %s185, 1
        %s1429 = scalar_lea.sflag [#allocation5], %s1428
        %s1430 = sand.u32 %s185, 1
        %s1431 = smul.addr %s1430, 64
        %s1432 = scalar_lea.vmem [#allocation6], %s1431
        // Predicated region
        $region53: #{tpu_custom_call.1} parent=47 // pred_check
          %p1433 = pneg %p195
        $region54: #{tpu_custom_call.1} parent=47 // pred_check_branch
          %1435 = sbr.rel (%p1433) target = $region56
        $region55: #{tpu_custom_call.1} parent=47 // pred_region
          %s1437 = ssub.s32 1024, 1024
          %1438 = vsyncadd %s1429, %s1437
          %s1439 = smul.addr %s25, 8
          %s1440 = smul.addr %s1439, 128
          %s1441 = scalar_lea.hbm %s7, %s1440
          %s1442 = sshll.u32 %s1432, 4
          %s1443 = int_to_ptr.vmem [resolvable:$true] %s1442
          %1448 = dma.vmem_to_hbm [thread:$0]  %s1443, 1024, %s1441, %s1429, 256, 256, 16
        $region56: #{tpu_custom_call.1} parent=47 // pred_fallthru
          _
      $region48: #{tpu_custom_call.1} parent=5 // pred_fallthru
        _
      %p1449 = scmp.le.s32.totalorder 2, %s20
      // Predicated region
      $region57: #{tpu_custom_call.1} parent=5 // pred_check
        %p1450 = pneg %p1449
      $region58: #{tpu_custom_call.1} parent=5 // pred_check_branch
        %1452 = sbr.rel (%p1450) target = $region60
      $region59: #{tpu_custom_call.1} parent=5 // pred_region
        %s1453 = ssub.s32 %s20, 2
        // Predicated region
        $region61: #{tpu_custom_call.1} parent=59 // pred_check
          %p1454 = pneg %p201
        $region62: #{tpu_custom_call.1} parent=59 // pred_check_branch
          %1456 = sbr.rel (%p1454) target = $region64
        $region63: #{tpu_custom_call.1} parent=59 // pred_region
          %s1457 = sand.u32 %s186, 1
          %s1458 = scalar_lea.sflag [#allocation5], %s1457
          %s1459 = sand.u32 %s186, 1
          %s1460 = smul.addr %s1459, 64
          %s1461 = scalar_lea.vmem [#allocation6], %s1460
          %1462 = dma.done %s1458, 1024
        $region64: #{tpu_custom_call.1} parent=59 // pred_fallthru
          _
      $region60: #{tpu_custom_call.1} parent=5 // pred_fallthru
        _
    $region6: #{tpu_custom_call.1} parent=1 // loop_footer
      %s24 = sadd.s32 1, %s20
    $region7: #{tpu_custom_call.1} parent=1 // loop_footer_branch
      %19 = sbr.rel target = $region3
    $region8: #{tpu_custom_call.1} parent=1 // loop_exit
      _
    %1463 = vsyncpa [#allocation4], 1
    %s1464 = scalar_lea.sflag [#allocation4], 1
    %1465 = vsyncpa %s1464, 1
    %1466 = vsyncpa [#allocation5], 1
    %s1467 = scalar_lea.sflag [#allocation5], 1
    %1468 = vsyncpa %s1467, 1

</llo_original>
